<compile_context>
chip_gen: v6e
topology: v6e:2x2x1
jax: 0.10.0
libtpu: 0.0.40
codegen_flags: <defaults>
</compile_context>

<pallas_src>
import jax
import jax.numpy as jnp
from jax import lax
from jax.experimental import pallas as pl
from jax.experimental.pallas import tpu as pltpu


def bn_conv2d_relu(x_nchw, w_oihw, conv_bias, gamma, beta, eps=1e-5):
    N, C_in, H, W = x_nchw.shape
    C_out = w_oihw.shape[0]
    M = N * H * W
    WCI = W * C_in
    WCO = W * C_out

    # ---------------- XLA-side glue (input-side tensors only, small) --------------
    # NHWC + spatial zero-pad, flatten (W+2, C_in) into one lane axis, cast to bf16.
    x_nhwc = jnp.transpose(x_nchw, (0, 2, 3, 1))
    xp = jnp.pad(x_nhwc, ((0, 0), (1, 1), (1, 1), (0, 0)))
    xp = xp.astype(jnp.bfloat16).reshape(N, H + 2, (W + 2) * C_in)

    # Per-tap block-diagonal weights: wblk[k] = kron(I_W, w_tap_k), k = di*3 + dj.
    # wblk[k, w*C_in + i, v*C_out + o] = (w == v) * weight[o, i, di, dj]
    w_taps = jnp.transpose(w_oihw, (2, 3, 1, 0)).reshape(9, C_in, C_out).astype(jnp.float32)
    eye_w = jnp.eye(W, dtype=jnp.float32)
    wblk = jnp.einsum('wv,kio->kwivo', eye_w, w_taps).reshape(9, WCI, WCO)
    wblk = wblk.astype(jnp.bfloat16)

    # Conv bias is intentionally NOT applied: training-mode BN subtracts the
    # per-channel mean, so a per-channel constant cancels exactly in the output.
    del conv_bias

    # ---------------- shared in-kernel conv tile: 9 shifted MXU matmuls -----------
    def _conv_tile(xp_ref, wblk_ref):
        acc = jnp.zeros((H, WCO), dtype=jnp.float32)
        for di in range(3):
            for dj in range(3):
                # shifted patch rows: (H, W*C_in) bf16, static slice of the padded image
                xs = xp_ref[0, di:di + H, dj * C_in: dj * C_in + WCI]
                acc = acc + jnp.dot(xs, wblk_ref[di * 3 + dj],
                                    preferred_element_type=jnp.float32)
        return acc  # (H, W*C_out) f32, lane-dense

    # ---------------- kernel A: conv + per-(w, channel) sum / sum-of-squares ------
    def stats_kernel(xp_ref, wblk_ref, stats_ref):
        y = _conv_tile(xp_ref, wblk_ref)
        stats_ref[0, 0:1, :] = jnp.sum(y, axis=0, keepdims=True)
        stats_ref[0, 1:2, :] = jnp.sum(y * y, axis=0, keepdims=True)

    # ---------------- kernel B: recompute conv, BN affine + ReLU, dense stores ----
    def bn_relu_kernel(xp_ref, wblk_ref, scale_ref, shift_ref, out_ref):
        y = _conv_tile(xp_ref, wblk_ref)
        out_ref[0] = jnp.maximum(y * scale_ref[...] + shift_ref[...], 0.0)

    cparams = pltpu.CompilerParams(
        dimension_semantics=("parallel",),          # no cross-step accumulators
        vmem_limit_bytes=32 * 1024 * 1024,          # tiles here are tiny; raise for
                                                    # larger tiles (cap ~48 MiB on v7x)
    )

    xp_spec = pl.BlockSpec((1, H + 2, (W + 2) * C_in), lambda n: (n, 0, 0))
    w_spec = pl.BlockSpec((9, WCI, WCO), lambda n: (0, 0, 0))

    stats_wide = pl.pallas_call(
        stats_kernel,
        out_shape=jax.ShapeDtypeStruct((N, 2, WCO), jnp.float32),
        grid_spec=pltpu.PrefetchScalarGridSpec(
            num_scalar_prefetch=0,
            grid=(N,),
            in_specs=[xp_spec, w_spec],
            out_specs=pl.BlockSpec((1, 2, WCO), lambda n: (n, 0, 0)),
        ),
        compiler_params=cparams,
    )(xp, wblk)

    # ---------------- tiny per-channel scalar math (XLA) --------------------------
    stats = stats_wide.reshape(N, 2, W, C_out).sum(axis=(0, 2))   # (2, C_out)
    mean = stats[0] / M
    var = jnp.maximum(stats[1] / M - mean * mean, 0.0)            # clamp >= 0
    # TODO(synk): for production-sized M, a two-pass / Welford variance is preferable
    # to the sum/sumsq form used here.
    inv_std = lax.rsqrt(var + eps)
    scale = gamma.astype(jnp.float32) * inv_std
    shift = beta.astype(jnp.float32) - mean * scale
    # tile per-channel scale/shift to the lane layout [w*C_out + o]
    scale_t = jnp.tile(scale[None, :], (W, 1)).reshape(1, WCO)
    shift_t = jnp.tile(shift[None, :], (W, 1)).reshape(1, WCO)

    out_wide = pl.pallas_call(
        bn_relu_kernel,
        out_shape=jax.ShapeDtypeStruct((N, H, WCO), jnp.float32),
        grid_spec=pltpu.PrefetchScalarGridSpec(
            num_scalar_prefetch=0,
            grid=(N,),
            in_specs=[xp_spec, w_spec,
                      pl.BlockSpec((1, WCO), lambda n: (0, 0)),
                      pl.BlockSpec((1, WCO), lambda n: (0, 0))],
            out_specs=pl.BlockSpec((1, H, WCO), lambda n: (n, 0, 0)),
        ),
        compiler_params=cparams,
    )(xp, wblk, scale_t, shift_t)

    # NHWC -> NCHW to match the PyTorch module contract.  (If the consumer accepts
    # NHWC, this single extra read+write pass over the output can be dropped.)
    out_nhwc = out_wide.reshape(N, H, W, C_out)
    return jnp.transpose(out_nhwc, (0, 3, 1, 2))


# -------------------------------------------------------------------------------
# Pure-JAX reference (module semantics) for the sanity check
# -------------------------------------------------------------------------------
def reference(x, w, b, gamma, beta, eps=1e-5):
    y = lax.conv_general_dilated(
        x.astype(jnp.float32), w.astype(jnp.float32), (1, 1), 'SAME',
        dimension_numbers=('NCHW', 'OIHW', 'NCHW'))
    y = y + b[None, :, None, None]
    mean = y.mean(axis=(0, 2, 3))
    var = ((y - mean[None, :, None, None]) ** 2).mean(axis=(0, 2, 3))
    yn = (y - mean[None, :, None, None]) * lax.rsqrt(var + eps)[None, :, None, None]
    return jnp.maximum(yn * gamma[None, :, None, None] + beta[None, :, None, None], 0.0)


if __name__ == "__main__":
    key = jax.random.PRNGKey(0)
    k_x, k_w, k_b, k_g, k_be = jax.random.split(key, 5)

    N, C_in, C_out, H, W = 2, 4, 8, 16, 16
    x = jax.random.normal(k_x, (N, C_in, H, W), dtype=jnp.float32)
    w = jax.random.normal(k_w, (C_out, C_in, 3, 3), dtype=jnp.float32) * 0.1
    b = jax.random.normal(k_b, (C_out,), dtype=jnp.float32) * 0.05
    gamma = 1.0 + 0.1 * jax.random.normal(k_g, (C_out,), dtype=jnp.float32)
    beta = 0.05 * jax.random.normal(k_be, (C_out,), dtype=jnp.float32)

    fn = jax.jit(bn_conv2d_relu)
    out = jax.block_until_ready(fn(x, w, b, gamma, beta))
    assert out.shape == (N, C_out, H, W)

    # Check 1: against the exact same algorithm at bf16 operand precision
    # (only f32 accumulation-order differences remain) -> tight tolerance.
    x_bf = x.astype(jnp.bfloat16).astype(jnp.float32)
    w_bf = w.astype(jnp.bfloat16).astype(jnp.float32)
    ref_bf16 = reference(x_bf, w_bf, b, gamma, beta)
    assert jnp.allclose(out, ref_bf16, atol=2e-3, rtol=2e-3), "mismatch vs bf16-consistent reference"

    # Check 2: against full-f32 module semantics; looser tolerance accounts for the
    # bf16 cast of the MXU operands (standard for TPU conv+BN).
    ref_f32 = reference(x, w, b, gamma, beta)
    assert jnp.allclose(out, ref_f32, atol=6e-2, rtol=6e-2), "mismatch vs f32 reference"

    print("KERNEL_OK")
</pallas_src>

<mosaic_0001>
module attributes {stable_mosaic.version = 11 : i64} {
  func.func @stats_kernel(%arg0: i32, %arg1: memref<1x18x72xbf16, #tpu.memory_space<vmem>>, %arg2: memref<9x64x128xbf16, #tpu.memory_space<vmem>>, %arg3: memref<1x2x128xf32, #tpu.memory_space<vmem>>) attributes {dimension_semantics = [#tpu.dimension_semantics<parallel>], iteration_bounds = array<i64: 2>, scalar_prefetch = 0 : i64, scratch_operands = 0 : i64, tpu.core_type = #tpu.core_type<tc>, window_params = [{transform_indices = @transform_0, window_bounds = array<i64: 1, 18, 72>}, {pipeline_mode = #tpu.pipeline_mode<synchronous>, transform_indices = @transform_1, window_bounds = array<i64: 9, 64, 128>}, {transform_indices = @transform_2, window_bounds = array<i64: 1, 2, 128>}]} {
    %cst = arith.constant 0.000000e+00 : f32
    %0 = vector.broadcast %cst : f32 to vector<16x128xf32>
    %c0 = arith.constant 0 : index
    %c0_0 = arith.constant 0 : index
    %c0_1 = arith.constant 0 : index
    %1 = vector.load %arg1[%c0, %c0_0, %c0_1] : memref<1x18x72xbf16, #tpu.memory_space<vmem>>, vector<1x16x64xbf16>
    %2 = vector.shape_cast %1 : vector<1x16x64xbf16> to vector<16x64xbf16>
    %c0_2 = arith.constant 0 : index
    %c0_3 = arith.constant 0 : index
    %c0_4 = arith.constant 0 : index
    %3 = vector.load %arg2[%c0_2, %c0_3, %c0_4] : memref<9x64x128xbf16, #tpu.memory_space<vmem>>, vector<1x64x128xbf16>
    %4 = vector.shape_cast %3 : vector<1x64x128xbf16> to vector<64x128xbf16>
    %cst_5 = arith.constant dense<0.000000e+00> : vector<16x128xf32>
    %5 = tpu.matmul %2, %4, %cst_5 {dimension_numbers = #tpu.dot_dimension_numbers<[1], [0], [0], [1], [0, 0, 1, 1], [], []>} : vector<16x64xbf16>, vector<64x128xbf16>, vector<16x128xf32> -> vector<16x128xf32>
    %6 = arith.addf %0, %5 : vector<16x128xf32>
    %c0_6 = arith.constant 0 : index
    %c0_7 = arith.constant 0 : index
    %c4 = arith.constant 4 : index
    %7 = vector.load %arg1[%c0_6, %c0_7, %c4] : memref<1x18x72xbf16, #tpu.memory_space<vmem>>, vector<1x16x64xbf16>
    %8 = vector.shape_cast %7 : vector<1x16x64xbf16> to vector<16x64xbf16>
    %c1 = arith.constant 1 : index
    %c0_8 = arith.constant 0 : index
    %c0_9 = arith.constant 0 : index
    %9 = vector.load %arg2[%c1, %c0_8, %c0_9] : memref<9x64x128xbf16, #tpu.memory_space<vmem>>, vector<1x64x128xbf16>
    %10 = vector.shape_cast %9 : vector<1x64x128xbf16> to vector<64x128xbf16>
    %cst_10 = arith.constant dense<0.000000e+00> : vector<16x128xf32>
    %11 = tpu.matmul %8, %10, %cst_10 {dimension_numbers = #tpu.dot_dimension_numbers<[1], [0], [0], [1], [0, 0, 1, 1], [], []>} : vector<16x64xbf16>, vector<64x128xbf16>, vector<16x128xf32> -> vector<16x128xf32>
    %12 = arith.addf %6, %11 : vector<16x128xf32>
    %c0_11 = arith.constant 0 : index
    %c0_12 = arith.constant 0 : index
    %c8 = arith.constant 8 : index
    %13 = vector.load %arg1[%c0_11, %c0_12, %c8] : memref<1x18x72xbf16, #tpu.memory_space<vmem>>, vector<1x16x64xbf16>
    %14 = vector.shape_cast %13 : vector<1x16x64xbf16> to vector<16x64xbf16>
    %c2 = arith.constant 2 : index
    %c0_13 = arith.constant 0 : index
    %c0_14 = arith.constant 0 : index
    %15 = vector.load %arg2[%c2, %c0_13, %c0_14] : memref<9x64x128xbf16, #tpu.memory_space<vmem>>, vector<1x64x128xbf16>
    %16 = vector.shape_cast %15 : vector<1x64x128xbf16> to vector<64x128xbf16>
    %cst_15 = arith.constant dense<0.000000e+00> : vector<16x128xf32>
    %17 = tpu.matmul %14, %16, %cst_15 {dimension_numbers = #tpu.dot_dimension_numbers<[1], [0], [0], [1], [0, 0, 1, 1], [], []>} : vector<16x64xbf16>, vector<64x128xbf16>, vector<16x128xf32> -> vector<16x128xf32>
    %18 = arith.addf %12, %17 : vector<16x128xf32>
    %c0_16 = arith.constant 0 : index
    %c1_17 = arith.constant 1 : index
    %c0_18 = arith.constant 0 : index
    %19 = vector.load %arg1[%c0_16, %c1_17, %c0_18] : memref<1x18x72xbf16, #tpu.memory_space<vmem>>, vector<1x16x64xbf16>
    %20 = vector.shape_cast %19 : vector<1x16x64xbf16> to vector<16x64xbf16>
    %c3 = arith.constant 3 : index
    %c0_19 = arith.constant 0 : index
    %c0_20 = arith.constant 0 : index
    %21 = vector.load %arg2[%c3, %c0_19, %c0_20] : memref<9x64x128xbf16, #tpu.memory_space<vmem>>, vector<1x64x128xbf16>
    %22 = vector.shape_cast %21 : vector<1x64x128xbf16> to vector<64x128xbf16>
    %cst_21 = arith.constant dense<0.000000e+00> : vector<16x128xf32>
    %23 = tpu.matmul %20, %22, %cst_21 {dimension_numbers = #tpu.dot_dimension_numbers<[1], [0], [0], [1], [0, 0, 1, 1], [], []>} : vector<16x64xbf16>, vector<64x128xbf16>, vector<16x128xf32> -> vector<16x128xf32>
    %24 = arith.addf %18, %23 : vector<16x128xf32>
    %c0_22 = arith.constant 0 : index
    %c1_23 = arith.constant 1 : index
    %c4_24 = arith.constant 4 : index
    %25 = vector.load %arg1[%c0_22, %c1_23, %c4_24] : memref<1x18x72xbf16, #tpu.memory_space<vmem>>, vector<1x16x64xbf16>
    %26 = vector.shape_cast %25 : vector<1x16x64xbf16> to vector<16x64xbf16>
    %c4_25 = arith.constant 4 : index
    %c0_26 = arith.constant 0 : index
    %c0_27 = arith.constant 0 : index
    %27 = vector.load %arg2[%c4_25, %c0_26, %c0_27] : memref<9x64x128xbf16, #tpu.memory_space<vmem>>, vector<1x64x128xbf16>
    %28 = vector.shape_cast %27 : vector<1x64x128xbf16> to vector<64x128xbf16>
    %cst_28 = arith.constant dense<0.000000e+00> : vector<16x128xf32>
    %29 = tpu.matmul %26, %28, %cst_28 {dimension_numbers = #tpu.dot_dimension_numbers<[1], [0], [0], [1], [0, 0, 1, 1], [], []>} : vector<16x64xbf16>, vector<64x128xbf16>, vector<16x128xf32> -> vector<16x128xf32>
    %30 = arith.addf %24, %29 : vector<16x128xf32>
    %c0_29 = arith.constant 0 : index
    %c1_30 = arith.constant 1 : index
    %c8_31 = arith.constant 8 : index
    %31 = vector.load %arg1[%c0_29, %c1_30, %c8_31] : memref<1x18x72xbf16, #tpu.memory_space<vmem>>, vector<1x16x64xbf16>
    %32 = vector.shape_cast %31 : vector<1x16x64xbf16> to vector<16x64xbf16>
    %c5 = arith.constant 5 : index
    %c0_32 = arith.constant 0 : index
    %c0_33 = arith.constant 0 : index
    %33 = vector.load %arg2[%c5, %c0_32, %c0_33] : memref<9x64x128xbf16, #tpu.memory_space<vmem>>, vector<1x64x128xbf16>
    %34 = vector.shape_cast %33 : vector<1x64x128xbf16> to vector<64x128xbf16>
    %cst_34 = arith.constant dense<0.000000e+00> : vector<16x128xf32>
    %35 = tpu.matmul %32, %34, %cst_34 {dimension_numbers = #tpu.dot_dimension_numbers<[1], [0], [0], [1], [0, 0, 1, 1], [], []>} : vector<16x64xbf16>, vector<64x128xbf16>, vector<16x128xf32> -> vector<16x128xf32>
    %36 = arith.addf %30, %35 : vector<16x128xf32>
    %c0_35 = arith.constant 0 : index
    %c2_36 = arith.constant 2 : index
    %c0_37 = arith.constant 0 : index
    %37 = vector.load %arg1[%c0_35, %c2_36, %c0_37] : memref<1x18x72xbf16, #tpu.memory_space<vmem>>, vector<1x16x64xbf16>
    %38 = vector.shape_cast %37 : vector<1x16x64xbf16> to vector<16x64xbf16>
    %c6 = arith.constant 6 : index
    %c0_38 = arith.constant 0 : index
    %c0_39 = arith.constant 0 : index
    %39 = vector.load %arg2[%c6, %c0_38, %c0_39] : memref<9x64x128xbf16, #tpu.memory_space<vmem>>, vector<1x64x128xbf16>
    %40 = vector.shape_cast %39 : vector<1x64x128xbf16> to vector<64x128xbf16>
    %cst_40 = arith.constant dense<0.000000e+00> : vector<16x128xf32>
    %41 = tpu.matmul %38, %40, %cst_40 {dimension_numbers = #tpu.dot_dimension_numbers<[1], [0], [0], [1], [0, 0, 1, 1], [], []>} : vector<16x64xbf16>, vector<64x128xbf16>, vector<16x128xf32> -> vector<16x128xf32>
    %42 = arith.addf %36, %41 : vector<16x128xf32>
    %c0_41 = arith.constant 0 : index
    %c2_42 = arith.constant 2 : index
    %c4_43 = arith.constant 4 : index
    %43 = vector.load %arg1[%c0_41, %c2_42, %c4_43] : memref<1x18x72xbf16, #tpu.memory_space<vmem>>, vector<1x16x64xbf16>
    %44 = vector.shape_cast %43 : vector<1x16x64xbf16> to vector<16x64xbf16>
    %c7 = arith.constant 7 : index
    %c0_44 = arith.constant 0 : index
    %c0_45 = arith.constant 0 : index
    %45 = vector.load %arg2[%c7, %c0_44, %c0_45] : memref<9x64x128xbf16, #tpu.memory_space<vmem>>, vector<1x64x128xbf16>
    %46 = vector.shape_cast %45 : vector<1x64x128xbf16> to vector<64x128xbf16>
    %cst_46 = arith.constant dense<0.000000e+00> : vector<16x128xf32>
    %47 = tpu.matmul %44, %46, %cst_46 {dimension_numbers = #tpu.dot_dimension_numbers<[1], [0], [0], [1], [0, 0, 1, 1], [], []>} : vector<16x64xbf16>, vector<64x128xbf16>, vector<16x128xf32> -> vector<16x128xf32>
    %48 = arith.addf %42, %47 : vector<16x128xf32>
    %c0_47 = arith.constant 0 : index
    %c2_48 = arith.constant 2 : index
    %c8_49 = arith.constant 8 : index
    %49 = vector.load %arg1[%c0_47, %c2_48, %c8_49] : memref<1x18x72xbf16, #tpu.memory_space<vmem>>, vector<1x16x64xbf16>
    %50 = vector.shape_cast %49 : vector<1x16x64xbf16> to vector<16x64xbf16>
    %c8_50 = arith.constant 8 : index
    %c0_51 = arith.constant 0 : index
    %c0_52 = arith.constant 0 : index
    %51 = vector.load %arg2[%c8_50, %c0_51, %c0_52] : memref<9x64x128xbf16, #tpu.memory_space<vmem>>, vector<1x64x128xbf16>
    %52 = vector.shape_cast %51 : vector<1x64x128xbf16> to vector<64x128xbf16>
    %cst_53 = arith.constant dense<0.000000e+00> : vector<16x128xf32>
    %53 = tpu.matmul %50, %52, %cst_53 {dimension_numbers = #tpu.dot_dimension_numbers<[1], [0], [0], [1], [0, 0, 1, 1], [], []>} : vector<16x64xbf16>, vector<64x128xbf16>, vector<16x128xf32> -> vector<16x128xf32>
    %54 = arith.addf %48, %53 : vector<16x128xf32>
    %cst_54 = arith.constant dense<0.000000e+00> : vector<128xf32>
    %55 = vector.multi_reduction <add>, %54, %cst_54 [0] : vector<16x128xf32> to vector<128xf32>
    %56 = vector.shape_cast %55 : vector<128xf32> to vector<1x128xf32>
    %c0_55 = arith.constant 0 : index
    %c0_56 = arith.constant 0 : index
    %c0_57 = arith.constant 0 : index
    %57 = vector.load %arg3[%c0_55, %c0_56, %c0_57] : memref<1x2x128xf32, #tpu.memory_space<vmem>>, vector<1x1x128xf32>
    %58 = vector.shape_cast %57 : vector<1x1x128xf32> to vector<1x128xf32>
    %59 = vector.shape_cast %56 : vector<1x128xf32> to vector<1x1x128xf32>
    tpu.vector_store %arg3[%c0_55, %c0_56, %c0_57], %59 {strides = array<i32>} : memref<1x2x128xf32, #tpu.memory_space<vmem>>, vector<1x1x128xf32>,
    %60 = arith.mulf %54, %54 : vector<16x128xf32>
    %cst_58 = arith.constant dense<0.000000e+00> : vector<128xf32>
    %61 = vector.multi_reduction <add>, %60, %cst_58 [0] : vector<16x128xf32> to vector<128xf32>
    %62 = vector.shape_cast %61 : vector<128xf32> to vector<1x128xf32>
    %c0_59 = arith.constant 0 : index
    %c1_60 = arith.constant 1 : index
    %c0_61 = arith.constant 0 : index
    %63 = vector.load %arg3[%c0_59, %c1_60, %c0_61] : memref<1x2x128xf32, #tpu.memory_space<vmem>>, vector<1x1x128xf32>
    %64 = vector.shape_cast %63 : vector<1x1x128xf32> to vector<1x128xf32>
    %65 = vector.shape_cast %62 : vector<1x128xf32> to vector<1x1x128xf32>
    tpu.vector_store %arg3[%c0_59, %c1_60, %c0_61], %65 {strides = array<i32>} : memref<1x2x128xf32, #tpu.memory_space<vmem>>, vector<1x1x128xf32>,
    return
  }
  func.func @transform_0(%arg0: i32) -> (i32, i32, i32) {
    %c0_i32 = arith.constant 0 : i32
    %c0_i32_0 = arith.constant 0 : i32
    %c0_i32_1 = arith.constant 0 : i32
    return %arg0, %c0_i32, %c0_i32_0 : i32, i32, i32
  }
  func.func @transform_1(%arg0: i32) -> (i32, i32, i32) {
    %c0_i32 = arith.constant 0 : i32
    %c0_i32_0 = arith.constant 0 : i32
    %c0_i32_1 = arith.constant 0 : i32
    %c0_i32_2 = arith.constant 0 : i32
    return %c0_i32, %c0_i32_0, %c0_i32_1 : i32, i32, i32
  }
  func.func @transform_2(%arg0: i32) -> (i32, i32, i32) {
    %c0_i32 = arith.constant 0 : i32
    %c0_i32_0 = arith.constant 0 : i32
    %c0_i32_1 = arith.constant 0 : i32
    return %arg0, %c0_i32, %c0_i32_0 : i32, i32, i32
  }
}

module attributes {stable_mosaic.version = 11 : i64} {
  func.func @bn_relu_kernel(%arg0: i32, %arg1: memref<1x18x72xbf16, #tpu.memory_space<vmem>>, %arg2: memref<9x64x128xbf16, #tpu.memory_space<vmem>>, %arg3: memref<1x128xf32, #tpu.memory_space<vmem>>, %arg4: memref<1x128xf32, #tpu.memory_space<vmem>>, %arg5: memref<1x16x128xf32, #tpu.memory_space<vmem>>) attributes {dimension_semantics = [#tpu.dimension_semantics<parallel>], iteration_bounds = array<i64: 2>, scalar_prefetch = 0 : i64, scratch_operands = 0 : i64, tpu.core_type = #tpu.core_type<tc>, window_params = [{transform_indices = @transform_0, window_bounds = array<i64: 1, 18, 72>}, {pipeline_mode = #tpu.pipeline_mode<synchronous>, transform_indices = @transform_1, window_bounds = array<i64: 9, 64, 128>}, {pipeline_mode = #tpu.pipeline_mode<synchronous>, transform_indices = @transform_2, window_bounds = array<i64: 1, 128>}, {pipeline_mode = #tpu.pipeline_mode<synchronous>, transform_indices = @transform_3, window_bounds = array<i64: 1, 128>}, {transform_indices = @transform_4, window_bounds = array<i64: 1, 16, 128>}]} {
    %cst = arith.constant 0.000000e+00 : f32
    %0 = vector.broadcast %cst : f32 to vector<16x128xf32>
    %c0 = arith.constant 0 : index
    %c0_0 = arith.constant 0 : index
    %c0_1 = arith.constant 0 : index
    %1 = vector.load %arg1[%c0, %c0_0, %c0_1] : memref<1x18x72xbf16, #tpu.memory_space<vmem>>, vector<1x16x64xbf16>
    %2 = vector.shape_cast %1 : vector<1x16x64xbf16> to vector<16x64xbf16>
    %c0_2 = arith.constant 0 : index
    %c0_3 = arith.constant 0 : index
    %c0_4 = arith.constant 0 : index
    %3 = vector.load %arg2[%c0_2, %c0_3, %c0_4] : memref<9x64x128xbf16, #tpu.memory_space<vmem>>, vector<1x64x128xbf16>
    %4 = vector.shape_cast %3 : vector<1x64x128xbf16> to vector<64x128xbf16>
    %cst_5 = arith.constant dense<0.000000e+00> : vector<16x128xf32>
    %5 = tpu.matmul %2, %4, %cst_5 {dimension_numbers = #tpu.dot_dimension_numbers<[1], [0], [0], [1], [0, 0, 1, 1], [], []>} : vector<16x64xbf16>, vector<64x128xbf16>, vector<16x128xf32> -> vector<16x128xf32>
    %6 = arith.addf %0, %5 : vector<16x128xf32>
    %c0_6 = arith.constant 0 : index
    %c0_7 = arith.constant 0 : index
    %c4 = arith.constant 4 : index
    %7 = vector.load %arg1[%c0_6, %c0_7, %c4] : memref<1x18x72xbf16, #tpu.memory_space<vmem>>, vector<1x16x64xbf16>
    %8 = vector.shape_cast %7 : vector<1x16x64xbf16> to vector<16x64xbf16>
    %c1 = arith.constant 1 : index
    %c0_8 = arith.constant 0 : index
    %c0_9 = arith.constant 0 : index
    %9 = vector.load %arg2[%c1, %c0_8, %c0_9] : memref<9x64x128xbf16, #tpu.memory_space<vmem>>, vector<1x64x128xbf16>
    %10 = vector.shape_cast %9 : vector<1x64x128xbf16> to vector<64x128xbf16>
    %cst_10 = arith.constant dense<0.000000e+00> : vector<16x128xf32>
    %11 = tpu.matmul %8, %10, %cst_10 {dimension_numbers = #tpu.dot_dimension_numbers<[1], [0], [0], [1], [0, 0, 1, 1], [], []>} : vector<16x64xbf16>, vector<64x128xbf16>, vector<16x128xf32> -> vector<16x128xf32>
    %12 = arith.addf %6, %11 : vector<16x128xf32>
    %c0_11 = arith.constant 0 : index
    %c0_12 = arith.constant 0 : index
    %c8 = arith.constant 8 : index
    %13 = vector.load %arg1[%c0_11, %c0_12, %c8] : memref<1x18x72xbf16, #tpu.memory_space<vmem>>, vector<1x16x64xbf16>
    %14 = vector.shape_cast %13 : vector<1x16x64xbf16> to vector<16x64xbf16>
    %c2 = arith.constant 2 : index
    %c0_13 = arith.constant 0 : index
    %c0_14 = arith.constant 0 : index
    %15 = vector.load %arg2[%c2, %c0_13, %c0_14] : memref<9x64x128xbf16, #tpu.memory_space<vmem>>, vector<1x64x128xbf16>
    %16 = vector.shape_cast %15 : vector<1x64x128xbf16> to vector<64x128xbf16>
    %cst_15 = arith.constant dense<0.000000e+00> : vector<16x128xf32>
    %17 = tpu.matmul %14, %16, %cst_15 {dimension_numbers = #tpu.dot_dimension_numbers<[1], [0], [0], [1], [0, 0, 1, 1], [], []>} : vector<16x64xbf16>, vector<64x128xbf16>, vector<16x128xf32> -> vector<16x128xf32>
    %18 = arith.addf %12, %17 : vector<16x128xf32>
    %c0_16 = arith.constant 0 : index
    %c1_17 = arith.constant 1 : index
    %c0_18 = arith.constant 0 : index
    %19 = vector.load %arg1[%c0_16, %c1_17, %c0_18] : memref<1x18x72xbf16, #tpu.memory_space<vmem>>, vector<1x16x64xbf16>
    %20 = vector.shape_cast %19 : vector<1x16x64xbf16> to vector<16x64xbf16>
    %c3 = arith.constant 3 : index
    %c0_19 = arith.constant 0 : index
    %c0_20 = arith.constant 0 : index
    %21 = vector.load %arg2[%c3, %c0_19, %c0_20] : memref<9x64x128xbf16, #tpu.memory_space<vmem>>, vector<1x64x128xbf16>
    %22 = vector.shape_cast %21 : vector<1x64x128xbf16> to vector<64x128xbf16>
    %cst_21 = arith.constant dense<0.000000e+00> : vector<16x128xf32>
    %23 = tpu.matmul %20, %22, %cst_21 {dimension_numbers = #tpu.dot_dimension_numbers<[1], [0], [0], [1], [0, 0, 1, 1], [], []>} : vector<16x64xbf16>, vector<64x128xbf16>, vector<16x128xf32> -> vector<16x128xf32>
    %24 = arith.addf %18, %23 : vector<16x128xf32>
    %c0_22 = arith.constant 0 : index
    %c1_23 = arith.constant 1 : index
    %c4_24 = arith.constant 4 : index
    %25 = vector.load %arg1[%c0_22, %c1_23, %c4_24] : memref<1x18x72xbf16, #tpu.memory_space<vmem>>, vector<1x16x64xbf16>
    %26 = vector.shape_cast %25 : vector<1x16x64xbf16> to vector<16x64xbf16>
    %c4_25 = arith.constant 4 : index
    %c0_26 = arith.constant 0 : index
    %c0_27 = arith.constant 0 : index
    %27 = vector.load %arg2[%c4_25, %c0_26, %c0_27] : memref<9x64x128xbf16, #tpu.memory_space<vmem>>, vector<1x64x128xbf16>
    %28 = vector.shape_cast %27 : vector<1x64x128xbf16> to vector<64x128xbf16>
    %cst_28 = arith.constant dense<0.000000e+00> : vector<16x128xf32>
    %29 = tpu.matmul %26, %28, %cst_28 {dimension_numbers = #tpu.dot_dimension_numbers<[1], [0], [0], [1], [0, 0, 1, 1], [], []>} : vector<16x64xbf16>, vector<64x128xbf16>, vector<16x128xf32> -> vector<16x128xf32>
    %30 = arith.addf %24, %29 : vector<16x128xf32>
    %c0_29 = arith.constant 0 : index
    %c1_30 = arith.constant 1 : index
    %c8_31 = arith.constant 8 : index
    %31 = vector.load %arg1[%c0_29, %c1_30, %c8_31] : memref<1x18x72xbf16, #tpu.memory_space<vmem>>, vector<1x16x64xbf16>
    %32 = vector.shape_cast %31 : vector<1x16x64xbf16> to vector<16x64xbf16>
    %c5 = arith.constant 5 : index
    %c0_32 = arith.constant 0 : index
    %c0_33 = arith.constant 0 : index
    %33 = vector.load %arg2[%c5, %c0_32, %c0_33] : memref<9x64x128xbf16, #tpu.memory_space<vmem>>, vector<1x64x128xbf16>
    %34 = vector.shape_cast %33 : vector<1x64x128xbf16> to vector<64x128xbf16>
    %cst_34 = arith.constant dense<0.000000e+00> : vector<16x128xf32>
    %35 = tpu.matmul %32, %34, %cst_34 {dimension_numbers = #tpu.dot_dimension_numbers<[1], [0], [0], [1], [0, 0, 1, 1], [], []>} : vector<16x64xbf16>, vector<64x128xbf16>, vector<16x128xf32> -> vector<16x128xf32>
    %36 = arith.addf %30, %35 : vector<16x128xf32>
    %c0_35 = arith.constant 0 : index
    %c2_36 = arith.constant 2 : index
    %c0_37 = arith.constant 0 : index
    %37 = vector.load %arg1[%c0_35, %c2_36, %c0_37] : memref<1x18x72xbf16, #tpu.memory_space<vmem>>, vector<1x16x64xbf16>
    %38 = vector.shape_cast %37 : vector<1x16x64xbf16> to vector<16x64xbf16>
    %c6 = arith.constant 6 : index
    %c0_38 = arith.constant 0 : index
    %c0_39 = arith.constant 0 : index
    %39 = vector.load %arg2[%c6, %c0_38, %c0_39] : memref<9x64x128xbf16, #tpu.memory_space<vmem>>, vector<1x64x128xbf16>
    %40 = vector.shape_cast %39 : vector<1x64x128xbf16> to vector<64x128xbf16>
    %cst_40 = arith.constant dense<0.000000e+00> : vector<16x128xf32>
    %41 = tpu.matmul %38, %40, %cst_40 {dimension_numbers = #tpu.dot_dimension_numbers<[1], [0], [0], [1], [0, 0, 1, 1], [], []>} : vector<16x64xbf16>, vector<64x128xbf16>, vector<16x128xf32> -> vector<16x128xf32>
    %42 = arith.addf %36, %41 : vector<16x128xf32>
    %c0_41 = arith.constant 0 : index
    %c2_42 = arith.constant 2 : index
    %c4_43 = arith.constant 4 : index
    %43 = vector.load %arg1[%c0_41, %c2_42, %c4_43] : memref<1x18x72xbf16, #tpu.memory_space<vmem>>, vector<1x16x64xbf16>
    %44 = vector.shape_cast %43 : vector<1x16x64xbf16> to vector<16x64xbf16>
    %c7 = arith.constant 7 : index
    %c0_44 = arith.constant 0 : index
    %c0_45 = arith.constant 0 : index
    %45 = vector.load %arg2[%c7, %c0_44, %c0_45] : memref<9x64x128xbf16, #tpu.memory_space<vmem>>, vector<1x64x128xbf16>
    %46 = vector.shape_cast %45 : vector<1x64x128xbf16> to vector<64x128xbf16>
    %cst_46 = arith.constant dense<0.000000e+00> : vector<16x128xf32>
    %47 = tpu.matmul %44, %46, %cst_46 {dimension_numbers = #tpu.dot_dimension_numbers<[1], [0], [0], [1], [0, 0, 1, 1], [], []>} : vector<16x64xbf16>, vector<64x128xbf16>, vector<16x128xf32> -> vector<16x128xf32>
    %48 = arith.addf %42, %47 : vector<16x128xf32>
    %c0_47 = arith.constant 0 : index
    %c2_48 = arith.constant 2 : index
    %c8_49 = arith.constant 8 : index
    %49 = vector.load %arg1[%c0_47, %c2_48, %c8_49] : memref<1x18x72xbf16, #tpu.memory_space<vmem>>, vector<1x16x64xbf16>
    %50 = vector.shape_cast %49 : vector<1x16x64xbf16> to vector<16x64xbf16>
    %c8_50 = arith.constant 8 : index
    %c0_51 = arith.constant 0 : index
    %c0_52 = arith.constant 0 : index
    %51 = vector.load %arg2[%c8_50, %c0_51, %c0_52] : memref<9x64x128xbf16, #tpu.memory_space<vmem>>, vector<1x64x128xbf16>
    %52 = vector.shape_cast %51 : vector<1x64x128xbf16> to vector<64x128xbf16>
    %cst_53 = arith.constant dense<0.000000e+00> : vector<16x128xf32>
    %53 = tpu.matmul %50, %52, %cst_53 {dimension_numbers = #tpu.dot_dimension_numbers<[1], [0], [0], [1], [0, 0, 1, 1], [], []>} : vector<16x64xbf16>, vector<64x128xbf16>, vector<16x128xf32> -> vector<16x128xf32>
    %54 = arith.addf %48, %53 : vector<16x128xf32>
    %c0_54 = arith.constant 0 : index
    %c0_55 = arith.constant 0 : index
    %55 = vector.load %arg3[%c0_54, %c0_55] : memref<1x128xf32, #tpu.memory_space<vmem>>, vector<1x128xf32>
    %56 = vector.broadcast %55 : vector<1x128xf32> to vector<16x128xf32>
    %57 = arith.mulf %54, %56 : vector<16x128xf32>
    %c0_56 = arith.constant 0 : index
    %c0_57 = arith.constant 0 : index
    %58 = vector.load %arg4[%c0_56, %c0_57] : memref<1x128xf32, #tpu.memory_space<vmem>>, vector<1x128xf32>
    %59 = vector.broadcast %58 : vector<1x128xf32> to vector<16x128xf32>
    %60 = arith.addf %57, %59 : vector<16x128xf32>
    %cst_58 = arith.constant 0.000000e+00 : f32
    %61 = vector.broadcast %cst_58 : f32 to vector<16x128xf32>
    %62 = arith.maximumf %60, %61 : vector<16x128xf32>
    %c0_59 = arith.constant 0 : index
    %c0_60 = arith.constant 0 : index
    %c0_61 = arith.constant 0 : index
    %63 = vector.load %arg5[%c0_59, %c0_60, %c0_61] : memref<1x16x128xf32, #tpu.memory_space<vmem>>, vector<1x16x128xf32>
    %64 = vector.shape_cast %63 : vector<1x16x128xf32> to vector<16x128xf32>
    %65 = vector.shape_cast %62 : vector<16x128xf32> to vector<1x16x128xf32>
    tpu.vector_store %arg5[%c0_59, %c0_60, %c0_61], %65 {strides = array<i32>} : memref<1x16x128xf32, #tpu.memory_space<vmem>>, vector<1x16x128xf32>,
    return
  }
  func.func @transform_0(%arg0: i32) -> (i32, i32, i32) {
    %c0_i32 = arith.constant 0 : i32
    %c0_i32_0 = arith.constant 0 : i32
    %c0_i32_1 = arith.constant 0 : i32
    return %arg0, %c0_i32, %c0_i32_0 : i32, i32, i32
  }
  func.func @transform_1(%arg0: i32) -> (i32, i32, i32) {
    %c0_i32 = arith.constant 0 : i32
    %c0_i32_0 = arith.constant 0 : i32
    %c0_i32_1 = arith.constant 0 : i32
    %c0_i32_2 = arith.constant 0 : i32
    return %c0_i32, %c0_i32_0, %c0_i32_1 : i32, i32, i32
  }
  func.func @transform_2(%arg0: i32) -> (i32, i32) {
    %c0_i32 = arith.constant 0 : i32
    %c0_i32_0 = arith.constant 0 : i32
    %c0_i32_1 = arith.constant 0 : i32
    return %c0_i32, %c0_i32_0 : i32, i32
  }
  func.func @transform_3(%arg0: i32) -> (i32, i32) {
    %c0_i32 = arith.constant 0 : i32
    %c0_i32_0 = arith.constant 0 : i32
    %c0_i32_1 = arith.constant 0 : i32
    return %c0_i32, %c0_i32_0 : i32, i32
  }
  func.func @transform_4(%arg0: i32) -> (i32, i32, i32) {
    %c0_i32 = arith.constant 0 : i32
    %c0_i32_0 = arith.constant 0 : i32
    %c0_i32_1 = arith.constant 0 : i32
    return %arg0, %c0_i32, %c0_i32_0 : i32, i32, i32
  }
}

</mosaic_0001>

<llo_original>
// kernel: tile.10
$region0: #{tile.10}
  #allocation0 [shape = 's32[1]{0}', space=sflag, size = 0x4, scoped, tag = 'scoped memory for tile.10']
  %s0 = inlined_call_operand.vmem [shape: f32[8], index: 0, kind: input, shape index: {}]
  %s1 = inlined_call_operand.vmem [shape: f32[16,1,1,8], index: 1, kind: output, shape index: {}]
  // Predicated region
  $region2: #{tile.10} parent=0 // pred_check
    _
  $region3: #{tile.10} parent=0 // pred_check_branch
    %3 = sbr.rel (0) target = $region5
  $region4: #{tile.10} parent=0 // pred_region
    _
  $region5: #{tile.10} parent=0 // pred_fallthru
    _
  %v4 = vld [vmem:[%s0] ss:$0 sm:$0xff]
  %5 = vst [vmem:[%s1] sm:$0xff] %v4
  %s6 = scalar_lea.vmem %s1, 8
  %7 = vst [vmem:[%s6] sm:$0xff] %v4

// kernel: tile.11
$region0: #{tile.11}
  %s0 = inlined_call_operand.vmem [shape: f32[16,1,1,8], index: 0, kind: input, shape index: {}]
  %s1 = inlined_call_operand.vmem [shape: f32[1,128], index: 1, kind: output, shape index: {}]
  $region1: #{tile.11} parent=0
    #allocation0 [shape = 'u8[4096]{0}', space=vmem, size = 0x1000, scoped, tag = 'scoped mem for output reshape']
    %v2 = vld [vmem:[%s0] sm:$0x1]
    %vm3 = vcmask 64512
    %4 = vst.msk [vmem:[#allocation0] sm:$0x1] %vm3, %v2
    %s5 = scalar_lea.vmem %s0, 15
    %v6 = vld [vmem:[%s5] sm:$0x1]
    %7 = vrot.lane.b32.xlu0 %v6, 120
    %v8 = vpop.permute.xlu0 %7
    %vm9 = vcmask 1048512
    %10 = vst.msk [vmem:[#allocation0] sm:$0x1] %vm9, %v8
    %s11 = scalar_lea.vmem %s0, 14
    %v12 = vld [vmem:[%s11] sm:$0x1]
    %13 = vrot.lane.b32.xlu0 %v12, 112
    %v14 = vpop.permute.xlu0 %13
    %vm15 = vcmask 982912
    %16 = vst.msk [vmem:[#allocation0] sm:$0x1] %vm15, %v14
    %s17 = scalar_lea.vmem %s0, 13
    %v18 = vld [vmem:[%s17] sm:$0x1]
    %19 = vrot.lane.b32.xlu0 %v18, 104
    %v20 = vpop.permute.xlu0 %19
    %vm21 = vcmask 917312
    %22 = vst.msk [vmem:[#allocation0] sm:$0x1] %vm21, %v20
    %s23 = scalar_lea.vmem %s0, 12
    %v24 = vld [vmem:[%s23] sm:$0x1]
    %25 = vrot.lane.b32.xlu0 %v24, 96
    %v26 = vpop.permute.xlu0 %25
    %vm27 = vcmask 851712
    %28 = vst.msk [vmem:[#allocation0] sm:$0x1] %vm27, %v26
    %s29 = scalar_lea.vmem %s0, 11
    %v30 = vld [vmem:[%s29] sm:$0x1]
    %31 = vrot.lane.b32.xlu0 %v30, 88
    %v32 = vpop.permute.xlu0 %31
    %vm33 = vcmask 786112
    %34 = vst.msk [vmem:[#allocation0] sm:$0x1] %vm33, %v32
    %s35 = scalar_lea.vmem %s0, 10
    %v36 = vld [vmem:[%s35] sm:$0x1]
    %37 = vrot.lane.b32.xlu0 %v36, 80
    %v38 = vpop.permute.xlu0 %37
    %vm39 = vcmask 720512
    %40 = vst.msk [vmem:[#allocation0] sm:$0x1] %vm39, %v38
    %s41 = scalar_lea.vmem %s0, 9
    %v42 = vld [vmem:[%s41] sm:$0x1]
    %43 = vrot.lane.b32.xlu0 %v42, 72
    %v44 = vpop.permute.xlu0 %43
    %vm45 = vcmask 654912
    %46 = vst.msk [vmem:[#allocation0] sm:$0x1] %vm45, %v44
    %s47 = scalar_lea.vmem %s0, 8
    %v48 = vld [vmem:[%s47] sm:$0x1]
    %49 = vrot.lane.b32.xlu0 %v48, 64
    %v50 = vpop.permute.xlu0 %49
    %vm51 = vcmask 589312
    %52 = vst.msk [vmem:[#allocation0] sm:$0x1] %vm51, %v50
    %s53 = scalar_lea.vmem %s0, 7
    %v54 = vld [vmem:[%s53] sm:$0x1]
    %55 = vrot.lane.b32.xlu0 %v54, 56
    %v56 = vpop.permute.xlu0 %55
    %vm57 = vcmask 523712
    %58 = vst.msk [vmem:[#allocation0] sm:$0x1] %vm57, %v56
    %s59 = scalar_lea.vmem %s0, 6
    %v60 = vld [vmem:[%s59] sm:$0x1]
    %61 = vrot.lane.b32.xlu0 %v60, 48
    %v62 = vpop.permute.xlu0 %61
    %vm63 = vcmask 458112
    %64 = vst.msk [vmem:[#allocation0] sm:$0x1] %vm63, %v62
    %s65 = scalar_lea.vmem %s0, 5
    %v66 = vld [vmem:[%s65] sm:$0x1]
    %67 = vrot.lane.b32.xlu0 %v66, 40
    %v68 = vpop.permute.xlu0 %67
    %vm69 = vcmask 392512
    %70 = vst.msk [vmem:[#allocation0] sm:$0x1] %vm69, %v68
    %s71 = scalar_lea.vmem %s0, 4
    %v72 = vld [vmem:[%s71] sm:$0x1]
    %73 = vrot.lane.b32.xlu0 %v72, 32
    %v74 = vpop.permute.xlu0 %73
    %vm75 = vcmask 326912
    %76 = vst.msk [vmem:[#allocation0] sm:$0x1] %vm75, %v74
    %s77 = scalar_lea.vmem %s0, 3
    %v78 = vld [vmem:[%s77] sm:$0x1]
    %79 = vrot.lane.b32.xlu0 %v78, 24
    %v80 = vpop.permute.xlu0 %79
    %vm81 = vcmask 261312
    %82 = vst.msk [vmem:[#allocation0] sm:$0x1] %vm81, %v80
    %s83 = scalar_lea.vmem %s0, 2
    %v84 = vld [vmem:[%s83] sm:$0x1]
    %85 = vrot.lane.b32.xlu0 %v84, 16
    %v86 = vpop.permute.xlu0 %85
    %vm87 = vcmask 195712
    %88 = vst.msk [vmem:[#allocation0] sm:$0x1] %vm87, %v86
    %s89 = scalar_lea.vmem %s0, 1
    %v90 = vld [vmem:[%s89] sm:$0x1]
    %91 = vrot.lane.b32.xlu0 %v90, 8
    %v92 = vpop.permute.xlu0 %91
    %vm93 = vcmask 130112
    %94 = vst.msk [vmem:[#allocation0] sm:$0x1] %vm93, %v92
    %s96 = sshll.u32 1, 1
    %s97 = ssub.s32 %s96, 1
    %v99 = vld [vmem:[#allocation0] sm:%s97]
    %s100 = sshll.u32 1, 1
    %s101 = ssub.s32 %s100, 1
    %102 = vst [vmem:[%s1] sm:%s101] %v99

// kernel: bn_conv2d_relu.3
$region0: #{bn_conv2d_relu.3}
  #allocation0 [shape = 'u32[]', space=smem, size = 0x4, offset = 0x4, fixed_abs, tag = 'smem constant byte address 0x4 - core index']
  #allocation1 [shape = 'u32[144,128]{1,0:T(1,128)}', space=vmem, size = 0x12000, scoped, tag = 'internal scratch']
  %s0 = inlined_call_operand.vmem [shape: bf16[2,18,72], index: 0, kind: input, shape index: {}]
  %s1 = inlined_call_operand.vmem [shape: bf16[9,64,128], index: 1, kind: input, shape index: {}]
  %s2 = inlined_call_operand.vmem [shape: f32[1,128], index: 2, kind: input, shape index: {}]
  %s3 = inlined_call_operand.vmem [shape: f32[1,128], index: 3, kind: input, shape index: {}]
  %s4 = inlined_call_operand.vmem [shape: f32[2,16,128], index: 4, kind: output, shape index: {}]
  %s5 = sld [smem:[#allocation0]]
  $region49: #{bn_conv2d_relu.3} parent=0
    _
  %s7 = ssub.s32 1, %s5
  %s8 = scalar_select 0, %s7, %s5
  loop: start=0, step=1, limit=4
  $region2: #{bn_conv2d_relu.3} parent=0 // loop_pre_header
    _
  $region3: #{bn_conv2d_relu.3} parent=0 // loop_header
    %s10 = sphi 0, %s14
    %p11 = scmp.ge.s32.totalorder %s10, 4
    %s20 = sphi 0, %s22
    %s23 = sphi 0, %s20
    %s24 = sphi 0, %s23
    %s40 = sphi 0, %s24
    %s44 = sphi 0, %s44
    %s46 = sphi 0, %s44
    %s47 = sphi 0, %s46
    %s61 = sphi 0, %s47
    %s65 = sphi 0, %s65
    %s67 = sphi 0, %s65
    %s68 = sphi 0, %s67
    %s82 = sphi 0, %s68
    %s86 = sphi 0, %s86
    %s88 = sphi 0, %s86
    %s89 = sphi 0, %s88
    %s103 = sphi 0, %s89
    %s109 = sphi 0, %s111
    %s112 = sphi 0, %s109
    %s113 = sphi 0, %s112
    %s129 = sphi 0, %s113
  $region4: #{bn_conv2d_relu.3} parent=0 // loop_header_branch
    %13 = sbr.rel (%p11) target = $region8
  $region5: #{bn_conv2d_relu.3} parent=0 // loop_body
    %s15 = ssub.s32 %s10, 1
    %s16 = ssub.s32 %s10, 2
    %s17 = sadd.s32 %s10, 1
    %s18 = ssub.s32 %s10, %s17
    %p19 = scmp.eq.s32.totalorder %s18, 0
    %s21 = sadd.s32 %s20, 1
    %s22 = scalar_select %p19, %s20, %s21
    %p25 = pneg %p19
    %p26 = scmp.eq.s32.totalorder %s10, 1
    %p27 = por %p25, %p26
    %p28 = scmp.ne.s32.totalorder %s20, %s23
    %p29 = scmp.eq.s32.totalorder %s10, 0
    %p30 = por %p28, %p29
    %p31 = scmp.ne.s32.totalorder %s20, %s23
    %p32 = scmp.eq.s32.totalorder %s15, 1
    %p33 = por %p31, %p32
    %p34 = scmp.ne.s32.totalorder %s23, %s24
    %p35 = scmp.eq.s32.totalorder %s15, 0
    %p36 = por %p34, %p35
    %p37 = scmp.ne.s32.totalorder %s23, %s24
    %p38 = scmp.eq.s32.totalorder %s16, 1
    %p39 = por %p37, %p38
    %p41 = scmp.ne.s32.totalorder %s24, %s40
    %p42 = scmp.eq.s32.totalorder %s16, 0
    %p43 = por %p41, %p42
    %s45 = sadd.s32 %s44, 1
    %p48 = scmp.eq.s32.totalorder %s10, 1
    %p49 = scmp.ne.s32.totalorder %s44, %s46
    %p50 = scmp.eq.s32.totalorder %s10, 0
    %p51 = por %p49, %p50
    %p52 = scmp.ne.s32.totalorder %s44, %s46
    %p53 = scmp.eq.s32.totalorder %s15, 1
    %p54 = por %p52, %p53
    %p55 = scmp.ne.s32.totalorder %s46, %s47
    %p56 = scmp.eq.s32.totalorder %s15, 0
    %p57 = por %p55, %p56
    %p58 = scmp.ne.s32.totalorder %s46, %s47
    %p59 = scmp.eq.s32.totalorder %s16, 1
    %p60 = por %p58, %p59
    %p62 = scmp.ne.s32.totalorder %s47, %s61
    %p63 = scmp.eq.s32.totalorder %s16, 0
    %p64 = por %p62, %p63
    %s66 = sadd.s32 %s65, 1
    %p69 = scmp.eq.s32.totalorder %s10, 1
    %p70 = scmp.ne.s32.totalorder %s65, %s67
    %p71 = scmp.eq.s32.totalorder %s10, 0
    %p72 = por %p70, %p71
    %p73 = scmp.ne.s32.totalorder %s65, %s67
    %p74 = scmp.eq.s32.totalorder %s15, 1
    %p75 = por %p73, %p74
    %p76 = scmp.ne.s32.totalorder %s67, %s68
    %p77 = scmp.eq.s32.totalorder %s15, 0
    %p78 = por %p76, %p77
    %p79 = scmp.ne.s32.totalorder %s67, %s68
    %p80 = scmp.eq.s32.totalorder %s16, 1
    %p81 = por %p79, %p80
    %p83 = scmp.ne.s32.totalorder %s68, %s82
    %p84 = scmp.eq.s32.totalorder %s16, 0
    %p85 = por %p83, %p84
    %s87 = sadd.s32 %s86, 1
    %p90 = scmp.eq.s32.totalorder %s10, 1
    %p91 = scmp.ne.s32.totalorder %s86, %s88
    %p92 = scmp.eq.s32.totalorder %s10, 0
    %p93 = por %p91, %p92
    %p94 = scmp.ne.s32.totalorder %s86, %s88
    %p95 = scmp.eq.s32.totalorder %s15, 1
    %p96 = por %p94, %p95
    %p97 = scmp.ne.s32.totalorder %s88, %s89
    %p98 = scmp.eq.s32.totalorder %s15, 0
    %p99 = por %p97, %p98
    %p100 = scmp.ne.s32.totalorder %s88, %s89
    %p101 = scmp.eq.s32.totalorder %s16, 1
    %p102 = por %p100, %p101
    %p104 = scmp.ne.s32.totalorder %s89, %s103
    %p105 = scmp.eq.s32.totalorder %s16, 0
    %p106 = por %p104, %p105
    %s107 = ssub.s32 %s10, %s17
    %p108 = scmp.eq.s32.totalorder %s107, 0
    %s110 = sadd.s32 %s109, 1
    %s111 = scalar_select %p108, %s109, %s110
    %p114 = pneg %p108
    %p115 = scmp.eq.s32.totalorder %s10, 1
    %p116 = por %p114, %p115
    %p117 = scmp.ne.s32.totalorder %s109, %s112
    %p118 = scmp.eq.s32.totalorder %s10, 0
    %p119 = por %p117, %p118
    %p120 = scmp.ne.s32.totalorder %s109, %s112
    %p121 = scmp.eq.s32.totalorder %s15, 1
    %p122 = por %p120, %p121
    %p123 = scmp.ne.s32.totalorder %s112, %s113
    %p124 = scmp.eq.s32.totalorder %s15, 0
    %p125 = por %p123, %p124
    %p126 = scmp.ne.s32.totalorder %s112, %s113
    %p127 = scmp.eq.s32.totalorder %s16, 1
    %p128 = por %p126, %p127
    %p130 = scmp.ne.s32.totalorder %s113, %s129
    %p131 = scmp.eq.s32.totalorder %s16, 0
    %p132 = por %p130, %p131
    %p133 = scmp.le.s32.totalorder 1, %s10
    %p134 = scmp.lt.s32.totalorder %s10, 3
    %p135 = pnand %p133, %p134
    %p136 = pneg %p135
    // Predicated region
    $region9: #{bn_conv2d_relu.3} parent=5 // pred_check
      _
    $region10: #{bn_conv2d_relu.3} parent=5 // pred_check_branch
      %138 = sbr.rel (%p135) target = $region12
    $region11: #{bn_conv2d_relu.3} parent=5 // pred_region
      %s139 = ssub.s32 %s10, 1
      // Predicated region
      $region13: #{bn_conv2d_relu.3} parent=11 // pred_check
        %p140 = pneg %p57
      $region14: #{bn_conv2d_relu.3} parent=11 // pred_check_branch
        %142 = sbr.rel (%p140) target = $region16
      $region15: #{bn_conv2d_relu.3} parent=11 // pred_region
        _
      $region16: #{bn_conv2d_relu.3} parent=11 // pred_fallthru
        _
      // Predicated region
      $region17: #{bn_conv2d_relu.3} parent=11 // pred_check
        %p143 = pneg %p78
      $region18: #{bn_conv2d_relu.3} parent=11 // pred_check_branch
        %145 = sbr.rel (%p143) target = $region20
      $region19: #{bn_conv2d_relu.3} parent=11 // pred_region
        _
      $region20: #{bn_conv2d_relu.3} parent=11 // pred_fallthru
        _
      // Predicated region
      $region21: #{bn_conv2d_relu.3} parent=11 // pred_check
        %p146 = pneg %p99
      $region22: #{bn_conv2d_relu.3} parent=11 // pred_check_branch
        %148 = sbr.rel (%p146) target = $region24
      $region23: #{bn_conv2d_relu.3} parent=11 // pred_region
        _
      $region24: #{bn_conv2d_relu.3} parent=11 // pred_fallthru
        _
    $region12: #{bn_conv2d_relu.3} parent=5 // pred_fallthru
      _
    %p149 = scmp.lt.s32.totalorder %s10, 2
    // Predicated region
    $region25: #{bn_conv2d_relu.3} parent=5 // pred_check
      %p150 = pneg %p149
    $region26: #{bn_conv2d_relu.3} parent=5 // pred_check_branch
      %152 = sbr.rel (%p150) target = $region28
    $region27: #{bn_conv2d_relu.3} parent=5 // pred_region
      // Predicated region
      $region29: #{bn_conv2d_relu.3} parent=27 // pred_check
        %p153 = pneg %p30
      $region30: #{bn_conv2d_relu.3} parent=27 // pred_check_branch
        %155 = sbr.rel (%p153) target = $region32
      $region31: #{bn_conv2d_relu.3} parent=27 // pred_region
        %p156 = scmp.lt.s32.totalorder %s10, 1
        %s157 = scalar_select %p156, %s10, 1
        %s158 = smul.addr %s157, 3
        %s159 = smul.addr %s158, 4
        %s160 = scalar_lea.vmem %s0, %s159
      $region32: #{bn_conv2d_relu.3} parent=27 // pred_fallthru
        _
    $region28: #{bn_conv2d_relu.3} parent=5 // pred_fallthru
      _
    %p161 = scmp.le.s32.totalorder 1, %s10
    %p162 = scmp.lt.s32.totalorder %s10, 3
    %p163 = pnand %p161, %p162
    %p164 = pneg %p163
    // Predicated region
    $region33: #{bn_conv2d_relu.3} parent=5 // pred_check
      _
    $region34: #{bn_conv2d_relu.3} parent=5 // pred_check_branch
      %166 = sbr.rel (%p163) target = $region36
    $region35: #{bn_conv2d_relu.3} parent=5 // pred_region
      %s167 = ssub.s32 %s10, 1
      %p168 = scmp.lt.s32.totalorder %s15, 1
      %s169 = scalar_select %p168, %s15, 1
      %s170 = smul.addr %s169, 3
      %s171 = smul.addr %s170, 4
      %s172 = scalar_lea.vmem %s0, %s171
      %p173 = pneg %p36
      %p174 = pneg %p33
      %p175 = pneg %p57
      %p176 = pneg %p54
      %p177 = pneg %p78
      %p178 = pneg %p75
      %p179 = pneg %p99
      %p180 = pneg %p96
      %p181 = pneg %p125
      %p182 = pneg %p122
      %p183 = scmp.lt.s32.totalorder %s15, 1
      %s184 = scalar_select %p183, %s15, 1
      %s185 = smul.addr %s184, 2
      %s186 = smul.addr %s185, 8
      %s187 = scalar_lea.vmem %s4, %s186
      %p188 = scmp.lt.s32.totalorder %s15, 1
      %s189 = scalar_select %p188, %s15, 1
      %s190 = smul.addr %s189, 3
      %s191 = smul.addr %s190, 4
      %s192 = scalar_lea.vmem %s0, %s191
      %p193 = scmp.lt.s32.totalorder %s15, 1
      %s194 = scalar_select %p193, %s15, 1
      %s195 = smul.addr %s194, 2
      %s196 = smul.addr %s195, 8
      %s197 = scalar_lea.vmem %s4, %s196
      %v199 = vld [vmem:[%s192] sm:$0xf]
      %v200 = vld [vmem:[%s192 + $0x4] sm:$0xf]
      %v201 = vld [vmem:[%s1] sm:$0xf]
      %v202 = vld [vmem:[%s1 + $0x4] sm:$0xf]
      %v203 = vld [vmem:[%s1 + $0x8] sm:$0xf]
      %v204 = vld [vmem:[%s1 + $0xc] sm:$0xf]
      %v205 = vld [vmem:[%s1 + $0x10] sm:$0xf]
      %v206 = vld [vmem:[%s1 + $0x14] sm:$0xf]
      %v207 = vld [vmem:[%s1 + $0x18] sm:$0xf]
      %v208 = vld [vmem:[%s1 + $0x1c] sm:$0xf]
      %s209 = scalar_lea.vmem %s1, 32
      %v210 = vld [vmem:[%s209] sm:$0xf]
      %v211 = vld [vmem:[%s209 + $0x4] sm:$0xf]
      %v212 = vld [vmem:[%s209 + $0x8] sm:$0xf]
      %v213 = vld [vmem:[%s209 + $0xc] sm:$0xf]
      %v214 = vld [vmem:[%s209 + $0x10] sm:$0xf]
      %v215 = vld [vmem:[%s209 + $0x14] sm:$0xf]
      %v216 = vld [vmem:[%s209 + $0x18] sm:$0xf]
      %v217 = vld [vmem:[%s209 + $0x1c] sm:$0xf]
      %v220 = vunpack.c.l.b16 %v199
      %v221 = vunpack.c.l.b16 %v200
      %v222 = vpack.c.b16 %v221, %v220
      %223 = vrot.lane.b32.xlu0 %v222, 124
      %v224 = vpop.permute.xlu0 %223
      %v233 = vunpack.c.l.b16 %v210
      %v234 = vunpack.c.l.b16 %v211
      %v235 = vunpack.c.l.b16 %v212
      %v236 = vunpack.c.l.b16 %v213
      %v237 = vunpack.c.l.b16 %v214
      %v238 = vunpack.c.l.b16 %v215
      %v239 = vunpack.c.l.b16 %v216
      %v240 = vunpack.c.l.b16 %v217
      %v241 = vpack.c.b16 %v234, %v233
      %v242 = vpack.c.b16 %v236, %v235
      %v243 = vpack.c.b16 %v238, %v237
      %v244 = vpack.c.b16 %v240, %v239
      %vm249 = vcmask 523264
      %v251 = vsel %vm249, %v224, 0
      %253 = vmatprep.subr.bf16.mxu0 0
      %254 = vmatpush1.bf16.msra.mxu0 0
      %255 = vmatprep.subr.bf16.mxu0 0
      %256 = vmatpush1.bf16.msra.mxu0 0
      %257 = vmatprep.subr.bf16.mxu0 0
      %258 = vmatpush1.bf16.msra.mxu0 0
      %259 = vmatprep.subr.bf16.mxu0 0
      %260 = vmatpush1.bf16.msra.mxu0 0
      %261 = vmatprep.subr.bf16.mxu0 0
      %262 = vmatpush1.bf16.msra.mxu0 %v244
      %263 = vmatprep.subr.bf16.mxu0 0
      %264 = vmatpush1.bf16.msra.mxu0 %v243
      %265 = vmatprep.subr.bf16.mxu0 0
      %266 = vmatpush1.bf16.msra.mxu0 %v242
      %267 = vmatprep.subr.bf16.mxu0 0
      %268 = vmatpush1.bf16.msra.mxu0 %v241
      %269 = vmatprep.subr.bf16.mxu0 0
      %270 = vmatpush2.bf16.msra.mxu0 0
      %271 = vmatprep.subr.bf16.mxu0 0
      %272 = vmatpush2.bf16.msra.mxu0 0
      %273 = vmatprep.subr.bf16.mxu0 0
      %274 = vmatpush2.bf16.msra.mxu0 0
      %275 = vmatprep.subr.bf16.mxu0 0
      %276 = vmatpush2.bf16.msra.mxu0 0
      %277 = vmatprep.subr.bf16.mxu0 0
      %278 = vmatpush2.bf16.msra.mxu0 0
      %279 = vmatprep.subr.bf16.mxu0 0
      %280 = vmatpush2.bf16.msra.mxu0 0
      %281 = vmatprep.subr.bf16.mxu0 0
      %282 = vmatpush2.bf16.msra.mxu0 0
      %283 = vmatprep.subr.bf16.mxu0 0
      %284 = vmatpush2.bf16.msra.mxu0 0
      %285 = vmatprep.mubr.bf16.mxu0 0
      %286 = vmatmul.mubr.bf16.gmra.mxu0 %v251
      %v287 = vpop.f32.mrf.mxu0
      %v288 = vadd.f32 0.0, %v287
      %v289 = vpop.f32.mrf.mxu0
      %v290 = vpop.f32.mrf.mxu0
      %v291 = vadd.f32 0.0, %v290
      %v292 = vpop.f32.mrf.mxu0
      %293 = vdwg.mxu0
      %v302 = vunpack.c.l.b16 %v201
      %v303 = vunpack.c.l.b16 %v202
      %v304 = vunpack.c.l.b16 %v203
      %v305 = vunpack.c.l.b16 %v204
      %v306 = vunpack.c.l.b16 %v205
      %v307 = vunpack.c.l.b16 %v206
      %v308 = vunpack.c.l.b16 %v207
      %v309 = vunpack.c.l.b16 %v208
      %v310 = vpack.c.b16 %v303, %v302
      %v311 = vpack.c.b16 %v305, %v304
      %v312 = vpack.c.b16 %v307, %v306
      %v313 = vpack.c.b16 %v309, %v308
      %v319 = vsel %vm249, %v222, 0
      %321 = vmatprep.subr.bf16.mxu0 0
      %322 = vmatpush1.bf16.msra.mxu0 0
      %323 = vmatprep.subr.bf16.mxu0 0
      %324 = vmatpush1.bf16.msra.mxu0 0
      %325 = vmatprep.subr.bf16.mxu0 0
      %326 = vmatpush1.bf16.msra.mxu0 0
      %327 = vmatprep.subr.bf16.mxu0 0
      %328 = vmatpush1.bf16.msra.mxu0 0
      %329 = vmatprep.subr.bf16.mxu0 0
      %330 = vmatpush1.bf16.msra.mxu0 %v313
      %331 = vmatprep.subr.bf16.mxu0 0
      %332 = vmatpush1.bf16.msra.mxu0 %v312
      %333 = vmatprep.subr.bf16.mxu0 0
      %334 = vmatpush1.bf16.msra.mxu0 %v311
      %335 = vmatprep.subr.bf16.mxu0 0
      %336 = vmatpush1.bf16.msra.mxu0 %v310
      %337 = vmatprep.subr.bf16.mxu0 0
      %338 = vmatpush2.bf16.msra.mxu0 0
      %339 = vmatprep.subr.bf16.mxu0 0
      %340 = vmatpush2.bf16.msra.mxu0 0
      %341 = vmatprep.subr.bf16.mxu0 0
      %342 = vmatpush2.bf16.msra.mxu0 0
      %343 = vmatprep.subr.bf16.mxu0 0
      %344 = vmatpush2.bf16.msra.mxu0 0
      %345 = vmatprep.subr.bf16.mxu0 0
      %346 = vmatpush2.bf16.msra.mxu0 0
      %347 = vmatprep.subr.bf16.mxu0 0
      %348 = vmatpush2.bf16.msra.mxu0 0
      %349 = vmatprep.subr.bf16.mxu0 0
      %350 = vmatpush2.bf16.msra.mxu0 0
      %351 = vmatprep.subr.bf16.mxu0 0
      %352 = vmatpush2.bf16.msra.mxu0 0
      %353 = vmatprep.mubr.bf16.mxu0 0
      %354 = vmatmul.mubr.bf16.gmra.mxu0 %v319
      %v355 = vpop.f32.mrf.mxu0
      %v356 = vadd.f32 %v288, %v355
      %v357 = vpop.f32.mrf.mxu0
      %v358 = vpop.f32.mrf.mxu0
      %v359 = vadd.f32 %v291, %v358
      %v360 = vpop.f32.mrf.mxu0
      %361 = vdwg.mxu0
      %s362 = scalar_lea.vmem %s1, 64
      %v363 = vld [vmem:[%s362] sm:$0xf]
      %v364 = vld [vmem:[%s362 + $0x4] sm:$0xf]
      %v365 = vld [vmem:[%s362 + $0x8] sm:$0xf]
      %v366 = vld [vmem:[%s362 + $0xc] sm:$0xf]
      %v367 = vld [vmem:[%s362 + $0x10] sm:$0xf]
      %v368 = vld [vmem:[%s362 + $0x14] sm:$0xf]
      %v369 = vld [vmem:[%s362 + $0x18] sm:$0xf]
      %v370 = vld [vmem:[%s362 + $0x1c] sm:$0xf]
      %371 = vrot.lane.b32.xlu0 %v222, 120
      %v372 = vpop.permute.xlu0 %371
      %v381 = vunpack.c.l.b16 %v363
      %v382 = vunpack.c.l.b16 %v364
      %v383 = vunpack.c.l.b16 %v365
      %v384 = vunpack.c.l.b16 %v366
      %v385 = vunpack.c.l.b16 %v367
      %v386 = vunpack.c.l.b16 %v368
      %v387 = vunpack.c.l.b16 %v369
      %v388 = vunpack.c.l.b16 %v370
      %v389 = vpack.c.b16 %v382, %v381
      %v390 = vpack.c.b16 %v384, %v383
      %v391 = vpack.c.b16 %v386, %v385
      %v392 = vpack.c.b16 %v388, %v387
      %v398 = vsel %vm249, %v372, 0
      %400 = vmatprep.subr.bf16.mxu0 0
      %401 = vmatpush1.bf16.msra.mxu0 0
      %402 = vmatprep.subr.bf16.mxu0 0
      %403 = vmatpush1.bf16.msra.mxu0 0
      %404 = vmatprep.subr.bf16.mxu0 0
      %405 = vmatpush1.bf16.msra.mxu0 0
      %406 = vmatprep.subr.bf16.mxu0 0
      %407 = vmatpush1.bf16.msra.mxu0 0
      %408 = vmatprep.subr.bf16.mxu0 0
      %409 = vmatpush1.bf16.msra.mxu0 %v392
      %410 = vmatprep.subr.bf16.mxu0 0
      %411 = vmatpush1.bf16.msra.mxu0 %v391
      %412 = vmatprep.subr.bf16.mxu0 0
      %413 = vmatpush1.bf16.msra.mxu0 %v390
      %414 = vmatprep.subr.bf16.mxu0 0
      %415 = vmatpush1.bf16.msra.mxu0 %v389
      %416 = vmatprep.subr.bf16.mxu0 0
      %417 = vmatpush2.bf16.msra.mxu0 0
      %418 = vmatprep.subr.bf16.mxu0 0
      %419 = vmatpush2.bf16.msra.mxu0 0
      %420 = vmatprep.subr.bf16.mxu0 0
      %421 = vmatpush2.bf16.msra.mxu0 0
      %422 = vmatprep.subr.bf16.mxu0 0
      %423 = vmatpush2.bf16.msra.mxu0 0
      %424 = vmatprep.subr.bf16.mxu0 0
      %425 = vmatpush2.bf16.msra.mxu0 0
      %426 = vmatprep.subr.bf16.mxu0 0
      %427 = vmatpush2.bf16.msra.mxu0 0
      %428 = vmatprep.subr.bf16.mxu0 0
      %429 = vmatpush2.bf16.msra.mxu0 0
      %430 = vmatprep.subr.bf16.mxu0 0
      %431 = vmatpush2.bf16.msra.mxu0 0
      %432 = vmatprep.mubr.bf16.mxu0 0
      %433 = vmatmul.mubr.bf16.gmra.mxu0 %v398
      %v434 = vpop.f32.mrf.mxu0
      %v435 = vadd.f32 0.0, %v434
      %v436 = vpop.f32.mrf.mxu0
      %v437 = vpop.f32.mrf.mxu0
      %v438 = vadd.f32 0.0, %v437
      %v439 = vpop.f32.mrf.mxu0
      %440 = vdwg.mxu0
      %v441 = vadd.f32 %v356, %v435
      %v442 = vadd.f32 %v359, %v438
      %v443 = vld [vmem:[%s192] sm:$0xf]
      %v444 = vld [vmem:[%s192 + $0x4] sm:$0xf]
      %v445 = vld [vmem:[%s192 + $0x8] sm:$0x1]
      %s446 = scalar_lea.vmem %s1, 96
      %v447 = vld [vmem:[%s446] sm:$0xf]
      %v448 = vld [vmem:[%s446 + $0x4] sm:$0xf]
      %v449 = vld [vmem:[%s446 + $0x8] sm:$0xf]
      %v450 = vld [vmem:[%s446 + $0xc] sm:$0xf]
      %v451 = vld [vmem:[%s446 + $0x10] sm:$0xf]
      %v452 = vld [vmem:[%s446 + $0x14] sm:$0xf]
      %v453 = vld [vmem:[%s446 + $0x18] sm:$0xf]
      %v454 = vld [vmem:[%s446 + $0x1c] sm:$0xf]
      %v458 = vunpack.c.l.b16 %v443
      %v459 = vunpack.c.l.b16 %v444
      %v460 = vunpack.c.l.b16 %v445
      %v461 = vpack.c.b16 %v459, %v458
      %v462 = vpack.c.b16 %v460, %v460
      %vm463 = vsmask.f32 7424
      %v465 = vshrl.u32 %v461, 16
      %v467 = vshll.u32 %v461, 16
      %v469 = vrot.slane %v467, 1
      %v470 = vor.u32 %v465, %v469
      %v472 = vshll.u32 %v462, 16
      %v474 = vrot.slane %v472, 1
      %v475 = vsel %vm463, %v470, %v474
      %v484 = vunpack.c.l.b16 %v447
      %v485 = vunpack.c.l.b16 %v448
      %v486 = vunpack.c.l.b16 %v449
      %v487 = vunpack.c.l.b16 %v450
      %v488 = vunpack.c.l.b16 %v451
      %v489 = vunpack.c.l.b16 %v452
      %v490 = vunpack.c.l.b16 %v453
      %v491 = vunpack.c.l.b16 %v454
      %v492 = vpack.c.b16 %v485, %v484
      %v493 = vpack.c.b16 %v487, %v486
      %v494 = vpack.c.b16 %v489, %v488
      %v495 = vpack.c.b16 %v491, %v490
      %v501 = vsel %vm249, %v475, 0
      %503 = vmatprep.subr.bf16.mxu0 0
      %504 = vmatpush1.bf16.msra.mxu0 0
      %505 = vmatprep.subr.bf16.mxu0 0
      %506 = vmatpush1.bf16.msra.mxu0 0
      %507 = vmatprep.subr.bf16.mxu0 0
      %508 = vmatpush1.bf16.msra.mxu0 0
      %509 = vmatprep.subr.bf16.mxu0 0
      %510 = vmatpush1.bf16.msra.mxu0 0
      %511 = vmatprep.subr.bf16.mxu0 0
      %512 = vmatpush1.bf16.msra.mxu0 %v495
      %513 = vmatprep.subr.bf16.mxu0 0
      %514 = vmatpush1.bf16.msra.mxu0 %v494
      %515 = vmatprep.subr.bf16.mxu0 0
      %516 = vmatpush1.bf16.msra.mxu0 %v493
      %517 = vmatprep.subr.bf16.mxu0 0
      %518 = vmatpush1.bf16.msra.mxu0 %v492
      %519 = vmatprep.subr.bf16.mxu0 0
      %520 = vmatpush2.bf16.msra.mxu0 0
      %521 = vmatprep.subr.bf16.mxu0 0
      %522 = vmatpush2.bf16.msra.mxu0 0
      %523 = vmatprep.subr.bf16.mxu0 0
      %524 = vmatpush2.bf16.msra.mxu0 0
      %525 = vmatprep.subr.bf16.mxu0 0
      %526 = vmatpush2.bf16.msra.mxu0 0
      %527 = vmatprep.subr.bf16.mxu0 0
      %528 = vmatpush2.bf16.msra.mxu0 0
      %529 = vmatprep.subr.bf16.mxu0 0
      %530 = vmatpush2.bf16.msra.mxu0 0
      %531 = vmatprep.subr.bf16.mxu0 0
      %532 = vmatpush2.bf16.msra.mxu0 0
      %533 = vmatprep.subr.bf16.mxu0 0
      %534 = vmatpush2.bf16.msra.mxu0 0
      %535 = vmatprep.mubr.bf16.mxu0 0
      %536 = vmatmul.mubr.bf16.gmra.mxu0 %v501
      %v537 = vpop.f32.mrf.mxu0
      %v538 = vadd.f32 0.0, %v537
      %v539 = vpop.f32.mrf.mxu0
      %v540 = vpop.f32.mrf.mxu0
      %v541 = vadd.f32 0.0, %v540
      %v542 = vpop.f32.mrf.mxu0
      %543 = vdwg.mxu0
      %v544 = vadd.f32 %v441, %v538
      %v545 = vadd.f32 %v442, %v541
      %s546 = scalar_lea.vmem %s1, 128
      %v547 = vld [vmem:[%s546] sm:$0xf]
      %v548 = vld [vmem:[%s546 + $0x4] sm:$0xf]
      %v549 = vld [vmem:[%s546 + $0x8] sm:$0xf]
      %v550 = vld [vmem:[%s546 + $0xc] sm:$0xf]
      %v551 = vld [vmem:[%s546 + $0x10] sm:$0xf]
      %v552 = vld [vmem:[%s546 + $0x14] sm:$0xf]
      %v553 = vld [vmem:[%s546 + $0x18] sm:$0xf]
      %v554 = vld [vmem:[%s546 + $0x1c] sm:$0xf]
      %555 = vrot.lane.b32.xlu0 %v475, 124
      %v556 = vpop.permute.xlu0 %555
      %v565 = vunpack.c.l.b16 %v547
      %v566 = vunpack.c.l.b16 %v548
      %v567 = vunpack.c.l.b16 %v549
      %v568 = vunpack.c.l.b16 %v550
      %v569 = vunpack.c.l.b16 %v551
      %v570 = vunpack.c.l.b16 %v552
      %v571 = vunpack.c.l.b16 %v553
      %v572 = vunpack.c.l.b16 %v554
      %v573 = vpack.c.b16 %v566, %v565
      %v574 = vpack.c.b16 %v568, %v567
      %v575 = vpack.c.b16 %v570, %v569
      %v576 = vpack.c.b16 %v572, %v571
      %v582 = vsel %vm249, %v556, 0
      %584 = vmatprep.subr.bf16.mxu0 0
      %585 = vmatpush1.bf16.msra.mxu0 0
      %586 = vmatprep.subr.bf16.mxu0 0
      %587 = vmatpush1.bf16.msra.mxu0 0
      %588 = vmatprep.subr.bf16.mxu0 0
      %589 = vmatpush1.bf16.msra.mxu0 0
      %590 = vmatprep.subr.bf16.mxu0 0
      %591 = vmatpush1.bf16.msra.mxu0 0
      %592 = vmatprep.subr.bf16.mxu0 0
      %593 = vmatpush1.bf16.msra.mxu0 %v576
      %594 = vmatprep.subr.bf16.mxu0 0
      %595 = vmatpush1.bf16.msra.mxu0 %v575
      %596 = vmatprep.subr.bf16.mxu0 0
      %597 = vmatpush1.bf16.msra.mxu0 %v574
      %598 = vmatprep.subr.bf16.mxu0 0
      %599 = vmatpush1.bf16.msra.mxu0 %v573
      %600 = vmatprep.subr.bf16.mxu0 0
      %601 = vmatpush2.bf16.msra.mxu0 0
      %602 = vmatprep.subr.bf16.mxu0 0
      %603 = vmatpush2.bf16.msra.mxu0 0
      %604 = vmatprep.subr.bf16.mxu0 0
      %605 = vmatpush2.bf16.msra.mxu0 0
      %606 = vmatprep.subr.bf16.mxu0 0
      %607 = vmatpush2.bf16.msra.mxu0 0
      %608 = vmatprep.subr.bf16.mxu0 0
      %609 = vmatpush2.bf16.msra.mxu0 0
      %610 = vmatprep.subr.bf16.mxu0 0
      %611 = vmatpush2.bf16.msra.mxu0 0
      %612 = vmatprep.subr.bf16.mxu0 0
      %613 = vmatpush2.bf16.msra.mxu0 0
      %614 = vmatprep.subr.bf16.mxu0 0
      %615 = vmatpush2.bf16.msra.mxu0 0
      %616 = vmatprep.mubr.bf16.mxu0 0
      %617 = vmatmul.mubr.bf16.gmra.mxu0 %v582
      %v618 = vpop.f32.mrf.mxu0
      %v619 = vadd.f32 0.0, %v618
      %v620 = vpop.f32.mrf.mxu0
      %v621 = vpop.f32.mrf.mxu0
      %v622 = vadd.f32 0.0, %v621
      %v623 = vpop.f32.mrf.mxu0
      %624 = vdwg.mxu0
      %v625 = vadd.f32 %v544, %v619
      %v626 = vadd.f32 %v545, %v622
      %s627 = scalar_lea.vmem %s1, 160
      %v628 = vld [vmem:[%s627] sm:$0xf]
      %v629 = vld [vmem:[%s627 + $0x4] sm:$0xf]
      %v630 = vld [vmem:[%s627 + $0x8] sm:$0xf]
      %v631 = vld [vmem:[%s627 + $0xc] sm:$0xf]
      %v632 = vld [vmem:[%s627 + $0x10] sm:$0xf]
      %v633 = vld [vmem:[%s627 + $0x14] sm:$0xf]
      %v634 = vld [vmem:[%s627 + $0x18] sm:$0xf]
      %v635 = vld [vmem:[%s627 + $0x1c] sm:$0xf]
      %636 = vrot.lane.b32.xlu0 %v475, 120
      %v637 = vpop.permute.xlu0 %636
      %v646 = vunpack.c.l.b16 %v628
      %v647 = vunpack.c.l.b16 %v629
      %v648 = vunpack.c.l.b16 %v630
      %v649 = vunpack.c.l.b16 %v631
      %v650 = vunpack.c.l.b16 %v632
      %v651 = vunpack.c.l.b16 %v633
      %v652 = vunpack.c.l.b16 %v634
      %v653 = vunpack.c.l.b16 %v635
      %v654 = vpack.c.b16 %v647, %v646
      %v655 = vpack.c.b16 %v649, %v648
      %v656 = vpack.c.b16 %v651, %v650
      %v657 = vpack.c.b16 %v653, %v652
      %v663 = vsel %vm249, %v637, 0
      %665 = vmatprep.subr.bf16.mxu0 0
      %666 = vmatpush1.bf16.msra.mxu0 0
      %667 = vmatprep.subr.bf16.mxu0 0
      %668 = vmatpush1.bf16.msra.mxu0 0
      %669 = vmatprep.subr.bf16.mxu0 0
      %670 = vmatpush1.bf16.msra.mxu0 0
      %671 = vmatprep.subr.bf16.mxu0 0
      %672 = vmatpush1.bf16.msra.mxu0 0
      %673 = vmatprep.subr.bf16.mxu0 0
      %674 = vmatpush1.bf16.msra.mxu0 %v657
      %675 = vmatprep.subr.bf16.mxu0 0
      %676 = vmatpush1.bf16.msra.mxu0 %v656
      %677 = vmatprep.subr.bf16.mxu0 0
      %678 = vmatpush1.bf16.msra.mxu0 %v655
      %679 = vmatprep.subr.bf16.mxu0 0
      %680 = vmatpush1.bf16.msra.mxu0 %v654
      %681 = vmatprep.subr.bf16.mxu0 0
      %682 = vmatpush2.bf16.msra.mxu0 0
      %683 = vmatprep.subr.bf16.mxu0 0
      %684 = vmatpush2.bf16.msra.mxu0 0
      %685 = vmatprep.subr.bf16.mxu0 0
      %686 = vmatpush2.bf16.msra.mxu0 0
      %687 = vmatprep.subr.bf16.mxu0 0
      %688 = vmatpush2.bf16.msra.mxu0 0
      %689 = vmatprep.subr.bf16.mxu0 0
      %690 = vmatpush2.bf16.msra.mxu0 0
      %691 = vmatprep.subr.bf16.mxu0 0
      %692 = vmatpush2.bf16.msra.mxu0 0
      %693 = vmatprep.subr.bf16.mxu0 0
      %694 = vmatpush2.bf16.msra.mxu0 0
      %695 = vmatprep.subr.bf16.mxu0 0
      %696 = vmatpush2.bf16.msra.mxu0 0
      %697 = vmatprep.mubr.bf16.mxu0 0
      %698 = vmatmul.mubr.bf16.gmra.mxu0 %v663
      %v699 = vpop.f32.mrf.mxu0
      %v700 = vadd.f32 0.0, %v699
      %v701 = vpop.f32.mrf.mxu0
      %v702 = vpop.f32.mrf.mxu0
      %v703 = vadd.f32 0.0, %v702
      %v704 = vpop.f32.mrf.mxu0
      %705 = vdwg.mxu0
      %v706 = vadd.f32 %v625, %v700
      %v707 = vadd.f32 %v626, %v703
      %v708 = vld [vmem:[%s192] sm:$0xe]
      %s709 = scalar_lea.vmem %s1, 192
      %v710 = vld [vmem:[%s709] sm:$0xf]
      %v711 = vld [vmem:[%s709 + $0x4] sm:$0xf]
      %v712 = vld [vmem:[%s709 + $0x8] sm:$0xf]
      %v713 = vld [vmem:[%s709 + $0xc] sm:$0xf]
      %v714 = vld [vmem:[%s709 + $0x10] sm:$0xf]
      %v715 = vld [vmem:[%s709 + $0x14] sm:$0xf]
      %v716 = vld [vmem:[%s709 + $0x18] sm:$0xf]
      %v717 = vld [vmem:[%s709 + $0x1c] sm:$0xf]
      %v719 = vunpack.c.l.b16 %v708
      %v720 = vpack.c.b16 %v459, %v719
      %vm721 = vcmask 1046528
      %v722 = vrot.slane %v720, 1
      %v723 = vrot.slane %v462, 1
      %v724 = vsel %vm721, %v722, %v723
      %v733 = vunpack.c.l.b16 %v710
      %v734 = vunpack.c.l.b16 %v711
      %v735 = vunpack.c.l.b16 %v712
      %v736 = vunpack.c.l.b16 %v713
      %v737 = vunpack.c.l.b16 %v714
      %v738 = vunpack.c.l.b16 %v715
      %v739 = vunpack.c.l.b16 %v716
      %v740 = vunpack.c.l.b16 %v717
      %v741 = vpack.c.b16 %v734, %v733
      %v742 = vpack.c.b16 %v736, %v735
      %v743 = vpack.c.b16 %v738, %v737
      %v744 = vpack.c.b16 %v740, %v739
      %v750 = vsel %vm249, %v724, 0
      %752 = vmatprep.subr.bf16.mxu0 0
      %753 = vmatpush1.bf16.msra.mxu0 0
      %754 = vmatprep.subr.bf16.mxu0 0
      %755 = vmatpush1.bf16.msra.mxu0 0
      %756 = vmatprep.subr.bf16.mxu0 0
      %757 = vmatpush1.bf16.msra.mxu0 0
      %758 = vmatprep.subr.bf16.mxu0 0
      %759 = vmatpush1.bf16.msra.mxu0 0
      %760 = vmatprep.subr.bf16.mxu0 0
      %761 = vmatpush1.bf16.msra.mxu0 %v744
      %762 = vmatprep.subr.bf16.mxu0 0
      %763 = vmatpush1.bf16.msra.mxu0 %v743
      %764 = vmatprep.subr.bf16.mxu0 0
      %765 = vmatpush1.bf16.msra.mxu0 %v742
      %766 = vmatprep.subr.bf16.mxu0 0
      %767 = vmatpush1.bf16.msra.mxu0 %v741
      %768 = vmatprep.subr.bf16.mxu0 0
      %769 = vmatpush2.bf16.msra.mxu0 0
      %770 = vmatprep.subr.bf16.mxu0 0
      %771 = vmatpush2.bf16.msra.mxu0 0
      %772 = vmatprep.subr.bf16.mxu0 0
      %773 = vmatpush2.bf16.msra.mxu0 0
      %774 = vmatprep.subr.bf16.mxu0 0
      %775 = vmatpush2.bf16.msra.mxu0 0
      %776 = vmatprep.subr.bf16.mxu0 0
      %777 = vmatpush2.bf16.msra.mxu0 0
      %778 = vmatprep.subr.bf16.mxu0 0
      %779 = vmatpush2.bf16.msra.mxu0 0
      %780 = vmatprep.subr.bf16.mxu0 0
      %781 = vmatpush2.bf16.msra.mxu0 0
      %782 = vmatprep.subr.bf16.mxu0 0
      %783 = vmatpush2.bf16.msra.mxu0 0
      %784 = vmatprep.mubr.bf16.mxu0 0
      %785 = vmatmul.mubr.bf16.gmra.mxu0 %v750
      %v786 = vpop.f32.mrf.mxu0
      %v787 = vadd.f32 0.0, %v786
      %v788 = vpop.f32.mrf.mxu0
      %v789 = vpop.f32.mrf.mxu0
      %v790 = vadd.f32 0.0, %v789
      %v791 = vpop.f32.mrf.mxu0
      %792 = vdwg.mxu0
      %v793 = vadd.f32 %v706, %v787
      %v794 = vadd.f32 %v707, %v790
      %s795 = scalar_lea.vmem %s1, 224
      %v796 = vld [vmem:[%s795] sm:$0xf]
      %v797 = vld [vmem:[%s795 + $0x4] sm:$0xf]
      %v798 = vld [vmem:[%s795 + $0x8] sm:$0xf]
      %v799 = vld [vmem:[%s795 + $0xc] sm:$0xf]
      %v800 = vld [vmem:[%s795 + $0x10] sm:$0xf]
      %v801 = vld [vmem:[%s795 + $0x14] sm:$0xf]
      %v802 = vld [vmem:[%s795 + $0x18] sm:$0xf]
      %v803 = vld [vmem:[%s795 + $0x1c] sm:$0xf]
      %804 = vrot.lane.b32.xlu0 %v724, 124
      %v805 = vpop.permute.xlu0 %804
      %v814 = vunpack.c.l.b16 %v796
      %v815 = vunpack.c.l.b16 %v797
      %v816 = vunpack.c.l.b16 %v798
      %v817 = vunpack.c.l.b16 %v799
      %v818 = vunpack.c.l.b16 %v800
      %v819 = vunpack.c.l.b16 %v801
      %v820 = vunpack.c.l.b16 %v802
      %v821 = vunpack.c.l.b16 %v803
      %v822 = vpack.c.b16 %v815, %v814
      %v823 = vpack.c.b16 %v817, %v816
      %v824 = vpack.c.b16 %v819, %v818
      %v825 = vpack.c.b16 %v821, %v820
      %v831 = vsel %vm249, %v805, 0
      %833 = vmatprep.subr.bf16.mxu0 0
      %834 = vmatpush1.bf16.msra.mxu0 0
      %835 = vmatprep.subr.bf16.mxu0 0
      %836 = vmatpush1.bf16.msra.mxu0 0
      %837 = vmatprep.subr.bf16.mxu0 0
      %838 = vmatpush1.bf16.msra.mxu0 0
      %839 = vmatprep.subr.bf16.mxu0 0
      %840 = vmatpush1.bf16.msra.mxu0 0
      %841 = vmatprep.subr.bf16.mxu0 0
      %842 = vmatpush1.bf16.msra.mxu0 %v825
      %843 = vmatprep.subr.bf16.mxu0 0
      %844 = vmatpush1.bf16.msra.mxu0 %v824
      %845 = vmatprep.subr.bf16.mxu0 0
      %846 = vmatpush1.bf16.msra.mxu0 %v823
      %847 = vmatprep.subr.bf16.mxu0 0
      %848 = vmatpush1.bf16.msra.mxu0 %v822
      %849 = vmatprep.subr.bf16.mxu0 0
      %850 = vmatpush2.bf16.msra.mxu0 0
      %851 = vmatprep.subr.bf16.mxu0 0
      %852 = vmatpush2.bf16.msra.mxu0 0
      %853 = vmatprep.subr.bf16.mxu0 0
      %854 = vmatpush2.bf16.msra.mxu0 0
      %855 = vmatprep.subr.bf16.mxu0 0
      %856 = vmatpush2.bf16.msra.mxu0 0
      %857 = vmatprep.subr.bf16.mxu0 0
      %858 = vmatpush2.bf16.msra.mxu0 0
      %859 = vmatprep.subr.bf16.mxu0 0
      %860 = vmatpush2.bf16.msra.mxu0 0
      %861 = vmatprep.subr.bf16.mxu0 0
      %862 = vmatpush2.bf16.msra.mxu0 0
      %863 = vmatprep.subr.bf16.mxu0 0
      %864 = vmatpush2.bf16.msra.mxu0 0
      %865 = vmatprep.mubr.bf16.mxu0 0
      %866 = vmatmul.mubr.bf16.gmra.mxu0 %v831
      %v867 = vpop.f32.mrf.mxu0
      %v868 = vadd.f32 0.0, %v867
      %v869 = vpop.f32.mrf.mxu0
      %v870 = vpop.f32.mrf.mxu0
      %v871 = vadd.f32 0.0, %v870
      %v872 = vpop.f32.mrf.mxu0
      %873 = vdwg.mxu0
      %v874 = vadd.f32 %v793, %v868
      %v875 = vadd.f32 %v794, %v871
      %s876 = scalar_lea.vmem %s1, 256
      %v877 = vld [vmem:[%s876] sm:$0xf]
      %v878 = vld [vmem:[%s876 + $0x4] sm:$0xf]
      %v879 = vld [vmem:[%s876 + $0x8] sm:$0xf]
      %v880 = vld [vmem:[%s876 + $0xc] sm:$0xf]
      %v881 = vld [vmem:[%s876 + $0x10] sm:$0xf]
      %v882 = vld [vmem:[%s876 + $0x14] sm:$0xf]
      %v883 = vld [vmem:[%s876 + $0x18] sm:$0xf]
      %v884 = vld [vmem:[%s876 + $0x1c] sm:$0xf]
      %885 = vrot.lane.b32.xlu0 %v724, 120
      %v886 = vpop.permute.xlu0 %885
      %v895 = vunpack.c.l.b16 %v877
      %v896 = vunpack.c.l.b16 %v878
      %v897 = vunpack.c.l.b16 %v879
      %v898 = vunpack.c.l.b16 %v880
      %v899 = vunpack.c.l.b16 %v881
      %v900 = vunpack.c.l.b16 %v882
      %v901 = vunpack.c.l.b16 %v883
      %v902 = vunpack.c.l.b16 %v884
      %v903 = vpack.c.b16 %v896, %v895
      %v904 = vpack.c.b16 %v898, %v897
      %v905 = vpack.c.b16 %v900, %v899
      %v906 = vpack.c.b16 %v902, %v901
      %v912 = vsel %vm249, %v886, 0
      %914 = vmatprep.subr.bf16.mxu0 0
      %915 = vmatpush1.bf16.msra.mxu0 0
      %916 = vmatprep.subr.bf16.mxu0 0
      %917 = vmatpush1.bf16.msra.mxu0 0
      %918 = vmatprep.subr.bf16.mxu0 0
      %919 = vmatpush1.bf16.msra.mxu0 0
      %920 = vmatprep.subr.bf16.mxu0 0
      %921 = vmatpush1.bf16.msra.mxu0 0
      %922 = vmatprep.subr.bf16.mxu0 0
      %923 = vmatpush1.bf16.msra.mxu0 %v906
      %924 = vmatprep.subr.bf16.mxu0 0
      %925 = vmatpush1.bf16.msra.mxu0 %v905
      %926 = vmatprep.subr.bf16.mxu0 0
      %927 = vmatpush1.bf16.msra.mxu0 %v904
      %928 = vmatprep.subr.bf16.mxu0 0
      %929 = vmatpush1.bf16.msra.mxu0 %v903
      %930 = vmatprep.subr.bf16.mxu0 0
      %931 = vmatpush2.bf16.msra.mxu0 0
      %932 = vmatprep.subr.bf16.mxu0 0
      %933 = vmatpush2.bf16.msra.mxu0 0
      %934 = vmatprep.subr.bf16.mxu0 0
      %935 = vmatpush2.bf16.msra.mxu0 0
      %936 = vmatprep.subr.bf16.mxu0 0
      %937 = vmatpush2.bf16.msra.mxu0 0
      %938 = vmatprep.subr.bf16.mxu0 0
      %939 = vmatpush2.bf16.msra.mxu0 0
      %940 = vmatprep.subr.bf16.mxu0 0
      %941 = vmatpush2.bf16.msra.mxu0 0
      %942 = vmatprep.subr.bf16.mxu0 0
      %943 = vmatpush2.bf16.msra.mxu0 0
      %944 = vmatprep.subr.bf16.mxu0 0
      %945 = vmatpush2.bf16.msra.mxu0 0
      %946 = vmatprep.mubr.bf16.mxu0 0
      %947 = vmatmul.mubr.bf16.gmra.mxu0 %v912
      %v948 = vpop.f32.mrf.mxu0
      %v949 = vadd.f32 0.0, %v948
      %v950 = vpop.f32.mrf.mxu0
      %v951 = vpop.f32.mrf.mxu0
      %v952 = vadd.f32 0.0, %v951
      %v953 = vpop.f32.mrf.mxu0
      %954 = vdwg.mxu0
      %v955 = vadd.f32 %v874, %v949
      %v956 = vadd.f32 %v875, %v952
      %v957 = vld [vmem:[%s2] sm:$0x1]
      %v959 = vlaneseq
      %v960 = vshrl.u32 %v959, 7
      %v961 = vsub.s32 0, %v960
      %v962 = vrot.slane %v957, %v961
      %v964 = vmul.f32 %v955, %v962
      %v965 = vmul.f32 %v956, %v962
      %v966 = vld [vmem:[%s3] sm:$0x1]
      %v968 = vlaneseq
      %v969 = vshrl.u32 %v968, 7
      %v970 = vsub.s32 0, %v969
      %v971 = vrot.slane %v966, %v970
      %v973 = vadd.f32 %v964, %v971
      %v974 = vadd.f32 %v965, %v971
      %v975 = vmax.f32 %v973, 0.0
      %v976 = vmax.f32 %v974, 0.0
      %977 = vst [vmem:[%s197] sm:$0xff] %v975
      %978 = vst [vmem:[%s197 + $0x8] sm:$0xff] %v976
      %p979 = scmp.lt.s32.totalorder %s15, 1
      %s980 = scalar_select %p979, %s15, 1
      %s981 = smul.addr %s980, 2
      %s982 = smul.addr %s981, 8
      %s983 = scalar_lea.vmem %s4, %s982
      // Predicated region
      $region37: #{bn_conv2d_relu.3} parent=35 // pred_check
        %p984 = pneg %p122
      $region38: #{bn_conv2d_relu.3} parent=35 // pred_check_branch
        %986 = sbr.rel (%p984) target = $region40
      $region39: #{bn_conv2d_relu.3} parent=35 // pred_region
        _
      $region40: #{bn_conv2d_relu.3} parent=35 // pred_fallthru
        _
    $region36: #{bn_conv2d_relu.3} parent=5 // pred_fallthru
      _
    %p987 = scmp.le.s32.totalorder 2, %s10
    // Predicated region
    $region41: #{bn_conv2d_relu.3} parent=5 // pred_check
      %p988 = pneg %p987
    $region42: #{bn_conv2d_relu.3} parent=5 // pred_check_branch
      %990 = sbr.rel (%p988) target = $region44
    $region43: #{bn_conv2d_relu.3} parent=5 // pred_region
      %s991 = ssub.s32 %s10, 2
      // Predicated region
      $region45: #{bn_conv2d_relu.3} parent=43 // pred_check
        %p992 = pneg %p128
      $region46: #{bn_conv2d_relu.3} parent=43 // pred_check_branch
        %994 = sbr.rel (%p992) target = $region48
      $region47: #{bn_conv2d_relu.3} parent=43 // pred_region
        %p995 = scmp.lt.s32.totalorder %s16, 1
        %s996 = scalar_select %p995, %s16, 1
        %s997 = smul.addr %s996, 2
        %s998 = smul.addr %s997, 8
        %s999 = scalar_lea.vmem %s4, %s998
      $region48: #{bn_conv2d_relu.3} parent=43 // pred_fallthru
        _
    $region44: #{bn_conv2d_relu.3} parent=5 // pred_fallthru
      _
  $region6: #{bn_conv2d_relu.3} parent=0 // loop_footer
    %s14 = sadd.s32 1, %s10
  $region7: #{bn_conv2d_relu.3} parent=0 // loop_footer_branch
    %9 = sbr.rel target = $region3
  $region8: #{bn_conv2d_relu.3} parent=0 // loop_exit
    _

// kernel: bn_conv2d_relu.2
$region0: #{bn_conv2d_relu.2}
  #allocation0 [shape = 'u32[]', space=smem, size = 0x4, offset = 0x4, fixed_abs, tag = 'smem constant byte address 0x4 - core index']
  #allocation1 [shape = 'u32[144,128]{1,0:T(1,128)}', space=vmem, size = 0x12000, scoped, tag = 'internal scratch']
  %s0 = inlined_call_operand.vmem [shape: bf16[2,18,72], index: 0, kind: input, shape index: {}]
  %s1 = inlined_call_operand.vmem [shape: bf16[9,64,128], index: 1, kind: input, shape index: {}]
  %s2 = inlined_call_operand.vmem [shape: f32[2,2,128], index: 2, kind: output, shape index: {}]
  %s3 = sld [smem:[#allocation0]]
  $region41: #{bn_conv2d_relu.2} parent=0
    _
  %s5 = ssub.s32 1, %s3
  %s6 = scalar_select 0, %s5, %s3
  loop: start=0, step=1, limit=4
  $region2: #{bn_conv2d_relu.2} parent=0 // loop_pre_header
    _
  $region3: #{bn_conv2d_relu.2} parent=0 // loop_header
    %s8 = sphi 0, %s12
    %p9 = scmp.ge.s32.totalorder %s8, 4
    %s18 = sphi 0, %s20
    %s21 = sphi 0, %s18
    %s22 = sphi 0, %s21
    %s38 = sphi 0, %s22
    %s42 = sphi 0, %s42
    %s44 = sphi 0, %s42
    %s45 = sphi 0, %s44
    %s59 = sphi 0, %s45
    %s65 = sphi 0, %s67
    %s68 = sphi 0, %s65
    %s69 = sphi 0, %s68
    %s85 = sphi 0, %s69
  $region4: #{bn_conv2d_relu.2} parent=0 // loop_header_branch
    %11 = sbr.rel (%p9) target = $region8
  $region5: #{bn_conv2d_relu.2} parent=0 // loop_body
    %s13 = ssub.s32 %s8, 1
    %s14 = ssub.s32 %s8, 2
    %s15 = sadd.s32 %s8, 1
    %s16 = ssub.s32 %s8, %s15
    %p17 = scmp.eq.s32.totalorder %s16, 0
    %s19 = sadd.s32 %s18, 1
    %s20 = scalar_select %p17, %s18, %s19
    %p23 = pneg %p17
    %p24 = scmp.eq.s32.totalorder %s8, 1
    %p25 = por %p23, %p24
    %p26 = scmp.ne.s32.totalorder %s18, %s21
    %p27 = scmp.eq.s32.totalorder %s8, 0
    %p28 = por %p26, %p27
    %p29 = scmp.ne.s32.totalorder %s18, %s21
    %p30 = scmp.eq.s32.totalorder %s13, 1
    %p31 = por %p29, %p30
    %p32 = scmp.ne.s32.totalorder %s21, %s22
    %p33 = scmp.eq.s32.totalorder %s13, 0
    %p34 = por %p32, %p33
    %p35 = scmp.ne.s32.totalorder %s21, %s22
    %p36 = scmp.eq.s32.totalorder %s14, 1
    %p37 = por %p35, %p36
    %p39 = scmp.ne.s32.totalorder %s22, %s38
    %p40 = scmp.eq.s32.totalorder %s14, 0
    %p41 = por %p39, %p40
    %s43 = sadd.s32 %s42, 1
    %p46 = scmp.eq.s32.totalorder %s8, 1
    %p47 = scmp.ne.s32.totalorder %s42, %s44
    %p48 = scmp.eq.s32.totalorder %s8, 0
    %p49 = por %p47, %p48
    %p50 = scmp.ne.s32.totalorder %s42, %s44
    %p51 = scmp.eq.s32.totalorder %s13, 1
    %p52 = por %p50, %p51
    %p53 = scmp.ne.s32.totalorder %s44, %s45
    %p54 = scmp.eq.s32.totalorder %s13, 0
    %p55 = por %p53, %p54
    %p56 = scmp.ne.s32.totalorder %s44, %s45
    %p57 = scmp.eq.s32.totalorder %s14, 1
    %p58 = por %p56, %p57
    %p60 = scmp.ne.s32.totalorder %s45, %s59
    %p61 = scmp.eq.s32.totalorder %s14, 0
    %p62 = por %p60, %p61
    %s63 = ssub.s32 %s8, %s15
    %p64 = scmp.eq.s32.totalorder %s63, 0
    %s66 = sadd.s32 %s65, 1
    %s67 = scalar_select %p64, %s65, %s66
    %p70 = pneg %p64
    %p71 = scmp.eq.s32.totalorder %s8, 1
    %p72 = por %p70, %p71
    %p73 = scmp.ne.s32.totalorder %s65, %s68
    %p74 = scmp.eq.s32.totalorder %s8, 0
    %p75 = por %p73, %p74
    %p76 = scmp.ne.s32.totalorder %s65, %s68
    %p77 = scmp.eq.s32.totalorder %s13, 1
    %p78 = por %p76, %p77
    %p79 = scmp.ne.s32.totalorder %s68, %s69
    %p80 = scmp.eq.s32.totalorder %s13, 0
    %p81 = por %p79, %p80
    %p82 = scmp.ne.s32.totalorder %s68, %s69
    %p83 = scmp.eq.s32.totalorder %s14, 1
    %p84 = por %p82, %p83
    %p86 = scmp.ne.s32.totalorder %s69, %s85
    %p87 = scmp.eq.s32.totalorder %s14, 0
    %p88 = por %p86, %p87
    %p89 = scmp.le.s32.totalorder 1, %s8
    %p90 = scmp.lt.s32.totalorder %s8, 3
    %p91 = pnand %p89, %p90
    %p92 = pneg %p91
    // Predicated region
    $region9: #{bn_conv2d_relu.2} parent=5 // pred_check
      _
    $region10: #{bn_conv2d_relu.2} parent=5 // pred_check_branch
      %94 = sbr.rel (%p91) target = $region12
    $region11: #{bn_conv2d_relu.2} parent=5 // pred_region
      %s95 = ssub.s32 %s8, 1
      // Predicated region
      $region13: #{bn_conv2d_relu.2} parent=11 // pred_check
        %p96 = pneg %p55
      $region14: #{bn_conv2d_relu.2} parent=11 // pred_check_branch
        %98 = sbr.rel (%p96) target = $region16
      $region15: #{bn_conv2d_relu.2} parent=11 // pred_region
        _
      $region16: #{bn_conv2d_relu.2} parent=11 // pred_fallthru
        _
    $region12: #{bn_conv2d_relu.2} parent=5 // pred_fallthru
      _
    %p99 = scmp.lt.s32.totalorder %s8, 2
    // Predicated region
    $region17: #{bn_conv2d_relu.2} parent=5 // pred_check
      %p100 = pneg %p99
    $region18: #{bn_conv2d_relu.2} parent=5 // pred_check_branch
      %102 = sbr.rel (%p100) target = $region20
    $region19: #{bn_conv2d_relu.2} parent=5 // pred_region
      // Predicated region
      $region21: #{bn_conv2d_relu.2} parent=19 // pred_check
        %p103 = pneg %p28
      $region22: #{bn_conv2d_relu.2} parent=19 // pred_check_branch
        %105 = sbr.rel (%p103) target = $region24
      $region23: #{bn_conv2d_relu.2} parent=19 // pred_region
        %p106 = scmp.lt.s32.totalorder %s8, 1
        %s107 = scalar_select %p106, %s8, 1
        %s108 = smul.addr %s107, 3
        %s109 = smul.addr %s108, 4
        %s110 = scalar_lea.vmem %s0, %s109
      $region24: #{bn_conv2d_relu.2} parent=19 // pred_fallthru
        _
    $region20: #{bn_conv2d_relu.2} parent=5 // pred_fallthru
      _
    %p111 = scmp.le.s32.totalorder 1, %s8
    %p112 = scmp.lt.s32.totalorder %s8, 3
    %p113 = pnand %p111, %p112
    %p114 = pneg %p113
    // Predicated region
    $region25: #{bn_conv2d_relu.2} parent=5 // pred_check
      _
    $region26: #{bn_conv2d_relu.2} parent=5 // pred_check_branch
      %116 = sbr.rel (%p113) target = $region28
    $region27: #{bn_conv2d_relu.2} parent=5 // pred_region
      %s117 = ssub.s32 %s8, 1
      %p118 = scmp.lt.s32.totalorder %s13, 1
      %s119 = scalar_select %p118, %s13, 1
      %s120 = smul.addr %s119, 3
      %s121 = smul.addr %s120, 4
      %s122 = scalar_lea.vmem %s0, %s121
      %p123 = pneg %p34
      %p124 = pneg %p31
      %p125 = pneg %p55
      %p126 = pneg %p52
      %p127 = pneg %p81
      %p128 = pneg %p78
      %p129 = scmp.lt.s32.totalorder %s13, 1
      %s130 = scalar_select %p129, %s13, 1
      %s131 = smul.addr %s130, 2
      %s132 = scalar_lea.vmem %s2, %s131
      %p133 = scmp.lt.s32.totalorder %s13, 1
      %s134 = scalar_select %p133, %s13, 1
      %s135 = smul.addr %s134, 3
      %s136 = smul.addr %s135, 4
      %s137 = scalar_lea.vmem %s0, %s136
      %p138 = scmp.lt.s32.totalorder %s13, 1
      %s139 = scalar_select %p138, %s13, 1
      %s140 = smul.addr %s139, 2
      %s141 = scalar_lea.vmem %s2, %s140
      %v143 = vld [vmem:[%s137] sm:$0xf]
      %v144 = vld [vmem:[%s137 + $0x4] sm:$0xf]
      %v145 = vld [vmem:[%s1] sm:$0xf]
      %v146 = vld [vmem:[%s1 + $0x4] sm:$0xf]
      %v147 = vld [vmem:[%s1 + $0x8] sm:$0xf]
      %v148 = vld [vmem:[%s1 + $0xc] sm:$0xf]
      %v149 = vld [vmem:[%s1 + $0x10] sm:$0xf]
      %v150 = vld [vmem:[%s1 + $0x14] sm:$0xf]
      %v151 = vld [vmem:[%s1 + $0x18] sm:$0xf]
      %v152 = vld [vmem:[%s1 + $0x1c] sm:$0xf]
      %s153 = scalar_lea.vmem %s1, 32
      %v154 = vld [vmem:[%s153] sm:$0xf]
      %v155 = vld [vmem:[%s153 + $0x4] sm:$0xf]
      %v156 = vld [vmem:[%s153 + $0x8] sm:$0xf]
      %v157 = vld [vmem:[%s153 + $0xc] sm:$0xf]
      %v158 = vld [vmem:[%s153 + $0x10] sm:$0xf]
      %v159 = vld [vmem:[%s153 + $0x14] sm:$0xf]
      %v160 = vld [vmem:[%s153 + $0x18] sm:$0xf]
      %v161 = vld [vmem:[%s153 + $0x1c] sm:$0xf]
      %v164 = vunpack.c.l.b16 %v143
      %v165 = vunpack.c.l.b16 %v144
      %v166 = vpack.c.b16 %v165, %v164
      %167 = vrot.lane.b32.xlu0 %v166, 124
      %v168 = vpop.permute.xlu0 %167
      %v177 = vunpack.c.l.b16 %v154
      %v178 = vunpack.c.l.b16 %v155
      %v179 = vunpack.c.l.b16 %v156
      %v180 = vunpack.c.l.b16 %v157
      %v181 = vunpack.c.l.b16 %v158
      %v182 = vunpack.c.l.b16 %v159
      %v183 = vunpack.c.l.b16 %v160
      %v184 = vunpack.c.l.b16 %v161
      %v185 = vpack.c.b16 %v178, %v177
      %v186 = vpack.c.b16 %v180, %v179
      %v187 = vpack.c.b16 %v182, %v181
      %v188 = vpack.c.b16 %v184, %v183
      %vm193 = vcmask 523264
      %v195 = vsel %vm193, %v168, 0
      %197 = vmatprep.subr.bf16.mxu0 0
      %198 = vmatpush1.bf16.msra.mxu0 0
      %199 = vmatprep.subr.bf16.mxu0 0
      %200 = vmatpush1.bf16.msra.mxu0 0
      %201 = vmatprep.subr.bf16.mxu0 0
      %202 = vmatpush1.bf16.msra.mxu0 0
      %203 = vmatprep.subr.bf16.mxu0 0
      %204 = vmatpush1.bf16.msra.mxu0 0
      %205 = vmatprep.subr.bf16.mxu0 0
      %206 = vmatpush1.bf16.msra.mxu0 %v188
      %207 = vmatprep.subr.bf16.mxu0 0
      %208 = vmatpush1.bf16.msra.mxu0 %v187
      %209 = vmatprep.subr.bf16.mxu0 0
      %210 = vmatpush1.bf16.msra.mxu0 %v186
      %211 = vmatprep.subr.bf16.mxu0 0
      %212 = vmatpush1.bf16.msra.mxu0 %v185
      %213 = vmatprep.subr.bf16.mxu0 0
      %214 = vmatpush2.bf16.msra.mxu0 0
      %215 = vmatprep.subr.bf16.mxu0 0
      %216 = vmatpush2.bf16.msra.mxu0 0
      %217 = vmatprep.subr.bf16.mxu0 0
      %218 = vmatpush2.bf16.msra.mxu0 0
      %219 = vmatprep.subr.bf16.mxu0 0
      %220 = vmatpush2.bf16.msra.mxu0 0
      %221 = vmatprep.subr.bf16.mxu0 0
      %222 = vmatpush2.bf16.msra.mxu0 0
      %223 = vmatprep.subr.bf16.mxu0 0
      %224 = vmatpush2.bf16.msra.mxu0 0
      %225 = vmatprep.subr.bf16.mxu0 0
      %226 = vmatpush2.bf16.msra.mxu0 0
      %227 = vmatprep.subr.bf16.mxu0 0
      %228 = vmatpush2.bf16.msra.mxu0 0
      %229 = vmatprep.mubr.bf16.mxu0 0
      %230 = vmatmul.mubr.bf16.gmra.mxu0 %v195
      %v231 = vpop.f32.mrf.mxu0
      %v232 = vadd.f32 0.0, %v231
      %v233 = vpop.f32.mrf.mxu0
      %v234 = vpop.f32.mrf.mxu0
      %v235 = vadd.f32 0.0, %v234
      %v236 = vpop.f32.mrf.mxu0
      %237 = vdwg.mxu0
      %v246 = vunpack.c.l.b16 %v145
      %v247 = vunpack.c.l.b16 %v146
      %v248 = vunpack.c.l.b16 %v147
      %v249 = vunpack.c.l.b16 %v148
      %v250 = vunpack.c.l.b16 %v149
      %v251 = vunpack.c.l.b16 %v150
      %v252 = vunpack.c.l.b16 %v151
      %v253 = vunpack.c.l.b16 %v152
      %v254 = vpack.c.b16 %v247, %v246
      %v255 = vpack.c.b16 %v249, %v248
      %v256 = vpack.c.b16 %v251, %v250
      %v257 = vpack.c.b16 %v253, %v252
      %v263 = vsel %vm193, %v166, 0
      %265 = vmatprep.subr.bf16.mxu0 0
      %266 = vmatpush1.bf16.msra.mxu0 0
      %267 = vmatprep.subr.bf16.mxu0 0
      %268 = vmatpush1.bf16.msra.mxu0 0
      %269 = vmatprep.subr.bf16.mxu0 0
      %270 = vmatpush1.bf16.msra.mxu0 0
      %271 = vmatprep.subr.bf16.mxu0 0
      %272 = vmatpush1.bf16.msra.mxu0 0
      %273 = vmatprep.subr.bf16.mxu0 0
      %274 = vmatpush1.bf16.msra.mxu0 %v257
      %275 = vmatprep.subr.bf16.mxu0 0
      %276 = vmatpush1.bf16.msra.mxu0 %v256
      %277 = vmatprep.subr.bf16.mxu0 0
      %278 = vmatpush1.bf16.msra.mxu0 %v255
      %279 = vmatprep.subr.bf16.mxu0 0
      %280 = vmatpush1.bf16.msra.mxu0 %v254
      %281 = vmatprep.subr.bf16.mxu0 0
      %282 = vmatpush2.bf16.msra.mxu0 0
      %283 = vmatprep.subr.bf16.mxu0 0
      %284 = vmatpush2.bf16.msra.mxu0 0
      %285 = vmatprep.subr.bf16.mxu0 0
      %286 = vmatpush2.bf16.msra.mxu0 0
      %287 = vmatprep.subr.bf16.mxu0 0
      %288 = vmatpush2.bf16.msra.mxu0 0
      %289 = vmatprep.subr.bf16.mxu0 0
      %290 = vmatpush2.bf16.msra.mxu0 0
      %291 = vmatprep.subr.bf16.mxu0 0
      %292 = vmatpush2.bf16.msra.mxu0 0
      %293 = vmatprep.subr.bf16.mxu0 0
      %294 = vmatpush2.bf16.msra.mxu0 0
      %295 = vmatprep.subr.bf16.mxu0 0
      %296 = vmatpush2.bf16.msra.mxu0 0
      %297 = vmatprep.mubr.bf16.mxu0 0
      %298 = vmatmul.mubr.bf16.gmra.mxu0 %v263
      %v299 = vpop.f32.mrf.mxu0
      %v300 = vadd.f32 %v232, %v299
      %v301 = vpop.f32.mrf.mxu0
      %v302 = vpop.f32.mrf.mxu0
      %v303 = vadd.f32 %v235, %v302
      %v304 = vpop.f32.mrf.mxu0
      %305 = vdwg.mxu0
      %s306 = scalar_lea.vmem %s1, 64
      %v307 = vld [vmem:[%s306] sm:$0xf]
      %v308 = vld [vmem:[%s306 + $0x4] sm:$0xf]
      %v309 = vld [vmem:[%s306 + $0x8] sm:$0xf]
      %v310 = vld [vmem:[%s306 + $0xc] sm:$0xf]
      %v311 = vld [vmem:[%s306 + $0x10] sm:$0xf]
      %v312 = vld [vmem:[%s306 + $0x14] sm:$0xf]
      %v313 = vld [vmem:[%s306 + $0x18] sm:$0xf]
      %v314 = vld [vmem:[%s306 + $0x1c] sm:$0xf]
      %315 = vrot.lane.b32.xlu0 %v166, 120
      %v316 = vpop.permute.xlu0 %315
      %v325 = vunpack.c.l.b16 %v307
      %v326 = vunpack.c.l.b16 %v308
      %v327 = vunpack.c.l.b16 %v309
      %v328 = vunpack.c.l.b16 %v310
      %v329 = vunpack.c.l.b16 %v311
      %v330 = vunpack.c.l.b16 %v312
      %v331 = vunpack.c.l.b16 %v313
      %v332 = vunpack.c.l.b16 %v314
      %v333 = vpack.c.b16 %v326, %v325
      %v334 = vpack.c.b16 %v328, %v327
      %v335 = vpack.c.b16 %v330, %v329
      %v336 = vpack.c.b16 %v332, %v331
      %v342 = vsel %vm193, %v316, 0
      %344 = vmatprep.subr.bf16.mxu0 0
      %345 = vmatpush1.bf16.msra.mxu0 0
      %346 = vmatprep.subr.bf16.mxu0 0
      %347 = vmatpush1.bf16.msra.mxu0 0
      %348 = vmatprep.subr.bf16.mxu0 0
      %349 = vmatpush1.bf16.msra.mxu0 0
      %350 = vmatprep.subr.bf16.mxu0 0
      %351 = vmatpush1.bf16.msra.mxu0 0
      %352 = vmatprep.subr.bf16.mxu0 0
      %353 = vmatpush1.bf16.msra.mxu0 %v336
      %354 = vmatprep.subr.bf16.mxu0 0
      %355 = vmatpush1.bf16.msra.mxu0 %v335
      %356 = vmatprep.subr.bf16.mxu0 0
      %357 = vmatpush1.bf16.msra.mxu0 %v334
      %358 = vmatprep.subr.bf16.mxu0 0
      %359 = vmatpush1.bf16.msra.mxu0 %v333
      %360 = vmatprep.subr.bf16.mxu0 0
      %361 = vmatpush2.bf16.msra.mxu0 0
      %362 = vmatprep.subr.bf16.mxu0 0
      %363 = vmatpush2.bf16.msra.mxu0 0
      %364 = vmatprep.subr.bf16.mxu0 0
      %365 = vmatpush2.bf16.msra.mxu0 0
      %366 = vmatprep.subr.bf16.mxu0 0
      %367 = vmatpush2.bf16.msra.mxu0 0
      %368 = vmatprep.subr.bf16.mxu0 0
      %369 = vmatpush2.bf16.msra.mxu0 0
      %370 = vmatprep.subr.bf16.mxu0 0
      %371 = vmatpush2.bf16.msra.mxu0 0
      %372 = vmatprep.subr.bf16.mxu0 0
      %373 = vmatpush2.bf16.msra.mxu0 0
      %374 = vmatprep.subr.bf16.mxu0 0
      %375 = vmatpush2.bf16.msra.mxu0 0
      %376 = vmatprep.mubr.bf16.mxu0 0
      %377 = vmatmul.mubr.bf16.gmra.mxu0 %v342
      %v378 = vpop.f32.mrf.mxu0
      %v379 = vadd.f32 0.0, %v378
      %v380 = vpop.f32.mrf.mxu0
      %v381 = vpop.f32.mrf.mxu0
      %v382 = vadd.f32 0.0, %v381
      %v383 = vpop.f32.mrf.mxu0
      %384 = vdwg.mxu0
      %v385 = vadd.f32 %v300, %v379
      %v386 = vadd.f32 %v303, %v382
      %v387 = vld [vmem:[%s137] sm:$0xf]
      %v388 = vld [vmem:[%s137 + $0x4] sm:$0xf]
      %v389 = vld [vmem:[%s137 + $0x8] sm:$0x1]
      %s390 = scalar_lea.vmem %s1, 96
      %v391 = vld [vmem:[%s390] sm:$0xf]
      %v392 = vld [vmem:[%s390 + $0x4] sm:$0xf]
      %v393 = vld [vmem:[%s390 + $0x8] sm:$0xf]
      %v394 = vld [vmem:[%s390 + $0xc] sm:$0xf]
      %v395 = vld [vmem:[%s390 + $0x10] sm:$0xf]
      %v396 = vld [vmem:[%s390 + $0x14] sm:$0xf]
      %v397 = vld [vmem:[%s390 + $0x18] sm:$0xf]
      %v398 = vld [vmem:[%s390 + $0x1c] sm:$0xf]
      %v402 = vunpack.c.l.b16 %v387
      %v403 = vunpack.c.l.b16 %v388
      %v404 = vunpack.c.l.b16 %v389
      %v405 = vpack.c.b16 %v403, %v402
      %v406 = vpack.c.b16 %v404, %v404
      %vm407 = vsmask.f32 7424
      %v409 = vshrl.u32 %v405, 16
      %v411 = vshll.u32 %v405, 16
      %v413 = vrot.slane %v411, 1
      %v414 = vor.u32 %v409, %v413
      %v416 = vshll.u32 %v406, 16
      %v418 = vrot.slane %v416, 1
      %v419 = vsel %vm407, %v414, %v418
      %v428 = vunpack.c.l.b16 %v391
      %v429 = vunpack.c.l.b16 %v392
      %v430 = vunpack.c.l.b16 %v393
      %v431 = vunpack.c.l.b16 %v394
      %v432 = vunpack.c.l.b16 %v395
      %v433 = vunpack.c.l.b16 %v396
      %v434 = vunpack.c.l.b16 %v397
      %v435 = vunpack.c.l.b16 %v398
      %v436 = vpack.c.b16 %v429, %v428
      %v437 = vpack.c.b16 %v431, %v430
      %v438 = vpack.c.b16 %v433, %v432
      %v439 = vpack.c.b16 %v435, %v434
      %v445 = vsel %vm193, %v419, 0
      %447 = vmatprep.subr.bf16.mxu0 0
      %448 = vmatpush1.bf16.msra.mxu0 0
      %449 = vmatprep.subr.bf16.mxu0 0
      %450 = vmatpush1.bf16.msra.mxu0 0
      %451 = vmatprep.subr.bf16.mxu0 0
      %452 = vmatpush1.bf16.msra.mxu0 0
      %453 = vmatprep.subr.bf16.mxu0 0
      %454 = vmatpush1.bf16.msra.mxu0 0
      %455 = vmatprep.subr.bf16.mxu0 0
      %456 = vmatpush1.bf16.msra.mxu0 %v439
      %457 = vmatprep.subr.bf16.mxu0 0
      %458 = vmatpush1.bf16.msra.mxu0 %v438
      %459 = vmatprep.subr.bf16.mxu0 0
      %460 = vmatpush1.bf16.msra.mxu0 %v437
      %461 = vmatprep.subr.bf16.mxu0 0
      %462 = vmatpush1.bf16.msra.mxu0 %v436
      %463 = vmatprep.subr.bf16.mxu0 0
      %464 = vmatpush2.bf16.msra.mxu0 0
      %465 = vmatprep.subr.bf16.mxu0 0
      %466 = vmatpush2.bf16.msra.mxu0 0
      %467 = vmatprep.subr.bf16.mxu0 0
      %468 = vmatpush2.bf16.msra.mxu0 0
      %469 = vmatprep.subr.bf16.mxu0 0
      %470 = vmatpush2.bf16.msra.mxu0 0
      %471 = vmatprep.subr.bf16.mxu0 0
      %472 = vmatpush2.bf16.msra.mxu0 0
      %473 = vmatprep.subr.bf16.mxu0 0
      %474 = vmatpush2.bf16.msra.mxu0 0
      %475 = vmatprep.subr.bf16.mxu0 0
      %476 = vmatpush2.bf16.msra.mxu0 0
      %477 = vmatprep.subr.bf16.mxu0 0
      %478 = vmatpush2.bf16.msra.mxu0 0
      %479 = vmatprep.mubr.bf16.mxu0 0
      %480 = vmatmul.mubr.bf16.gmra.mxu0 %v445
      %v481 = vpop.f32.mrf.mxu0
      %v482 = vadd.f32 0.0, %v481
      %v483 = vpop.f32.mrf.mxu0
      %v484 = vpop.f32.mrf.mxu0
      %v485 = vadd.f32 0.0, %v484
      %v486 = vpop.f32.mrf.mxu0
      %487 = vdwg.mxu0
      %v488 = vadd.f32 %v385, %v482
      %v489 = vadd.f32 %v386, %v485
      %s490 = scalar_lea.vmem %s1, 128
      %v491 = vld [vmem:[%s490] sm:$0xf]
      %v492 = vld [vmem:[%s490 + $0x4] sm:$0xf]
      %v493 = vld [vmem:[%s490 + $0x8] sm:$0xf]
      %v494 = vld [vmem:[%s490 + $0xc] sm:$0xf]
      %v495 = vld [vmem:[%s490 + $0x10] sm:$0xf]
      %v496 = vld [vmem:[%s490 + $0x14] sm:$0xf]
      %v497 = vld [vmem:[%s490 + $0x18] sm:$0xf]
      %v498 = vld [vmem:[%s490 + $0x1c] sm:$0xf]
      %499 = vrot.lane.b32.xlu0 %v419, 124
      %v500 = vpop.permute.xlu0 %499
      %v509 = vunpack.c.l.b16 %v491
      %v510 = vunpack.c.l.b16 %v492
      %v511 = vunpack.c.l.b16 %v493
      %v512 = vunpack.c.l.b16 %v494
      %v513 = vunpack.c.l.b16 %v495
      %v514 = vunpack.c.l.b16 %v496
      %v515 = vunpack.c.l.b16 %v497
      %v516 = vunpack.c.l.b16 %v498
      %v517 = vpack.c.b16 %v510, %v509
      %v518 = vpack.c.b16 %v512, %v511
      %v519 = vpack.c.b16 %v514, %v513
      %v520 = vpack.c.b16 %v516, %v515
      %v526 = vsel %vm193, %v500, 0
      %528 = vmatprep.subr.bf16.mxu0 0
      %529 = vmatpush1.bf16.msra.mxu0 0
      %530 = vmatprep.subr.bf16.mxu0 0
      %531 = vmatpush1.bf16.msra.mxu0 0
      %532 = vmatprep.subr.bf16.mxu0 0
      %533 = vmatpush1.bf16.msra.mxu0 0
      %534 = vmatprep.subr.bf16.mxu0 0
      %535 = vmatpush1.bf16.msra.mxu0 0
      %536 = vmatprep.subr.bf16.mxu0 0
      %537 = vmatpush1.bf16.msra.mxu0 %v520
      %538 = vmatprep.subr.bf16.mxu0 0
      %539 = vmatpush1.bf16.msra.mxu0 %v519
      %540 = vmatprep.subr.bf16.mxu0 0
      %541 = vmatpush1.bf16.msra.mxu0 %v518
      %542 = vmatprep.subr.bf16.mxu0 0
      %543 = vmatpush1.bf16.msra.mxu0 %v517
      %544 = vmatprep.subr.bf16.mxu0 0
      %545 = vmatpush2.bf16.msra.mxu0 0
      %546 = vmatprep.subr.bf16.mxu0 0
      %547 = vmatpush2.bf16.msra.mxu0 0
      %548 = vmatprep.subr.bf16.mxu0 0
      %549 = vmatpush2.bf16.msra.mxu0 0
      %550 = vmatprep.subr.bf16.mxu0 0
      %551 = vmatpush2.bf16.msra.mxu0 0
      %552 = vmatprep.subr.bf16.mxu0 0
      %553 = vmatpush2.bf16.msra.mxu0 0
      %554 = vmatprep.subr.bf16.mxu0 0
      %555 = vmatpush2.bf16.msra.mxu0 0
      %556 = vmatprep.subr.bf16.mxu0 0
      %557 = vmatpush2.bf16.msra.mxu0 0
      %558 = vmatprep.subr.bf16.mxu0 0
      %559 = vmatpush2.bf16.msra.mxu0 0
      %560 = vmatprep.mubr.bf16.mxu0 0
      %561 = vmatmul.mubr.bf16.gmra.mxu0 %v526
      %v562 = vpop.f32.mrf.mxu0
      %v563 = vadd.f32 0.0, %v562
      %v564 = vpop.f32.mrf.mxu0
      %v565 = vpop.f32.mrf.mxu0
      %v566 = vadd.f32 0.0, %v565
      %v567 = vpop.f32.mrf.mxu0
      %568 = vdwg.mxu0
      %v569 = vadd.f32 %v488, %v563
      %v570 = vadd.f32 %v489, %v566
      %s571 = scalar_lea.vmem %s1, 160
      %v572 = vld [vmem:[%s571] sm:$0xf]
      %v573 = vld [vmem:[%s571 + $0x4] sm:$0xf]
      %v574 = vld [vmem:[%s571 + $0x8] sm:$0xf]
      %v575 = vld [vmem:[%s571 + $0xc] sm:$0xf]
      %v576 = vld [vmem:[%s571 + $0x10] sm:$0xf]
      %v577 = vld [vmem:[%s571 + $0x14] sm:$0xf]
      %v578 = vld [vmem:[%s571 + $0x18] sm:$0xf]
      %v579 = vld [vmem:[%s571 + $0x1c] sm:$0xf]
      %580 = vrot.lane.b32.xlu0 %v419, 120
      %v581 = vpop.permute.xlu0 %580
      %v590 = vunpack.c.l.b16 %v572
      %v591 = vunpack.c.l.b16 %v573
      %v592 = vunpack.c.l.b16 %v574
      %v593 = vunpack.c.l.b16 %v575
      %v594 = vunpack.c.l.b16 %v576
      %v595 = vunpack.c.l.b16 %v577
      %v596 = vunpack.c.l.b16 %v578
      %v597 = vunpack.c.l.b16 %v579
      %v598 = vpack.c.b16 %v591, %v590
      %v599 = vpack.c.b16 %v593, %v592
      %v600 = vpack.c.b16 %v595, %v594
      %v601 = vpack.c.b16 %v597, %v596
      %v607 = vsel %vm193, %v581, 0
      %609 = vmatprep.subr.bf16.mxu0 0
      %610 = vmatpush1.bf16.msra.mxu0 0
      %611 = vmatprep.subr.bf16.mxu0 0
      %612 = vmatpush1.bf16.msra.mxu0 0
      %613 = vmatprep.subr.bf16.mxu0 0
      %614 = vmatpush1.bf16.msra.mxu0 0
      %615 = vmatprep.subr.bf16.mxu0 0
      %616 = vmatpush1.bf16.msra.mxu0 0
      %617 = vmatprep.subr.bf16.mxu0 0
      %618 = vmatpush1.bf16.msra.mxu0 %v601
      %619 = vmatprep.subr.bf16.mxu0 0
      %620 = vmatpush1.bf16.msra.mxu0 %v600
      %621 = vmatprep.subr.bf16.mxu0 0
      %622 = vmatpush1.bf16.msra.mxu0 %v599
      %623 = vmatprep.subr.bf16.mxu0 0
      %624 = vmatpush1.bf16.msra.mxu0 %v598
      %625 = vmatprep.subr.bf16.mxu0 0
      %626 = vmatpush2.bf16.msra.mxu0 0
      %627 = vmatprep.subr.bf16.mxu0 0
      %628 = vmatpush2.bf16.msra.mxu0 0
      %629 = vmatprep.subr.bf16.mxu0 0
      %630 = vmatpush2.bf16.msra.mxu0 0
      %631 = vmatprep.subr.bf16.mxu0 0
      %632 = vmatpush2.bf16.msra.mxu0 0
      %633 = vmatprep.subr.bf16.mxu0 0
      %634 = vmatpush2.bf16.msra.mxu0 0
      %635 = vmatprep.subr.bf16.mxu0 0
      %636 = vmatpush2.bf16.msra.mxu0 0
      %637 = vmatprep.subr.bf16.mxu0 0
      %638 = vmatpush2.bf16.msra.mxu0 0
      %639 = vmatprep.subr.bf16.mxu0 0
      %640 = vmatpush2.bf16.msra.mxu0 0
      %641 = vmatprep.mubr.bf16.mxu0 0
      %642 = vmatmul.mubr.bf16.gmra.mxu0 %v607
      %v643 = vpop.f32.mrf.mxu0
      %v644 = vadd.f32 0.0, %v643
      %v645 = vpop.f32.mrf.mxu0
      %v646 = vpop.f32.mrf.mxu0
      %v647 = vadd.f32 0.0, %v646
      %v648 = vpop.f32.mrf.mxu0
      %649 = vdwg.mxu0
      %v650 = vadd.f32 %v569, %v644
      %v651 = vadd.f32 %v570, %v647
      %v652 = vld [vmem:[%s137] sm:$0xe]
      %s653 = scalar_lea.vmem %s1, 192
      %v654 = vld [vmem:[%s653] sm:$0xf]
      %v655 = vld [vmem:[%s653 + $0x4] sm:$0xf]
      %v656 = vld [vmem:[%s653 + $0x8] sm:$0xf]
      %v657 = vld [vmem:[%s653 + $0xc] sm:$0xf]
      %v658 = vld [vmem:[%s653 + $0x10] sm:$0xf]
      %v659 = vld [vmem:[%s653 + $0x14] sm:$0xf]
      %v660 = vld [vmem:[%s653 + $0x18] sm:$0xf]
      %v661 = vld [vmem:[%s653 + $0x1c] sm:$0xf]
      %v663 = vunpack.c.l.b16 %v652
      %v664 = vpack.c.b16 %v403, %v663
      %vm665 = vcmask 1046528
      %v666 = vrot.slane %v664, 1
      %v667 = vrot.slane %v406, 1
      %v668 = vsel %vm665, %v666, %v667
      %v677 = vunpack.c.l.b16 %v654
      %v678 = vunpack.c.l.b16 %v655
      %v679 = vunpack.c.l.b16 %v656
      %v680 = vunpack.c.l.b16 %v657
      %v681 = vunpack.c.l.b16 %v658
      %v682 = vunpack.c.l.b16 %v659
      %v683 = vunpack.c.l.b16 %v660
      %v684 = vunpack.c.l.b16 %v661
      %v685 = vpack.c.b16 %v678, %v677
      %v686 = vpack.c.b16 %v680, %v679
      %v687 = vpack.c.b16 %v682, %v681
      %v688 = vpack.c.b16 %v684, %v683
      %v694 = vsel %vm193, %v668, 0
      %696 = vmatprep.subr.bf16.mxu0 0
      %697 = vmatpush1.bf16.msra.mxu0 0
      %698 = vmatprep.subr.bf16.mxu0 0
      %699 = vmatpush1.bf16.msra.mxu0 0
      %700 = vmatprep.subr.bf16.mxu0 0
      %701 = vmatpush1.bf16.msra.mxu0 0
      %702 = vmatprep.subr.bf16.mxu0 0
      %703 = vmatpush1.bf16.msra.mxu0 0
      %704 = vmatprep.subr.bf16.mxu0 0
      %705 = vmatpush1.bf16.msra.mxu0 %v688
      %706 = vmatprep.subr.bf16.mxu0 0
      %707 = vmatpush1.bf16.msra.mxu0 %v687
      %708 = vmatprep.subr.bf16.mxu0 0
      %709 = vmatpush1.bf16.msra.mxu0 %v686
      %710 = vmatprep.subr.bf16.mxu0 0
      %711 = vmatpush1.bf16.msra.mxu0 %v685
      %712 = vmatprep.subr.bf16.mxu0 0
      %713 = vmatpush2.bf16.msra.mxu0 0
      %714 = vmatprep.subr.bf16.mxu0 0
      %715 = vmatpush2.bf16.msra.mxu0 0
      %716 = vmatprep.subr.bf16.mxu0 0
      %717 = vmatpush2.bf16.msra.mxu0 0
      %718 = vmatprep.subr.bf16.mxu0 0
      %719 = vmatpush2.bf16.msra.mxu0 0
      %720 = vmatprep.subr.bf16.mxu0 0
      %721 = vmatpush2.bf16.msra.mxu0 0
      %722 = vmatprep.subr.bf16.mxu0 0
      %723 = vmatpush2.bf16.msra.mxu0 0
      %724 = vmatprep.subr.bf16.mxu0 0
      %725 = vmatpush2.bf16.msra.mxu0 0
      %726 = vmatprep.subr.bf16.mxu0 0
      %727 = vmatpush2.bf16.msra.mxu0 0
      %728 = vmatprep.mubr.bf16.mxu0 0
      %729 = vmatmul.mubr.bf16.gmra.mxu0 %v694
      %v730 = vpop.f32.mrf.mxu0
      %v731 = vadd.f32 0.0, %v730
      %v732 = vpop.f32.mrf.mxu0
      %v733 = vpop.f32.mrf.mxu0
      %v734 = vadd.f32 0.0, %v733
      %v735 = vpop.f32.mrf.mxu0
      %736 = vdwg.mxu0
      %v737 = vadd.f32 %v650, %v731
      %v738 = vadd.f32 %v651, %v734
      %s739 = scalar_lea.vmem %s1, 224
      %v740 = vld [vmem:[%s739] sm:$0xf]
      %v741 = vld [vmem:[%s739 + $0x4] sm:$0xf]
      %v742 = vld [vmem:[%s739 + $0x8] sm:$0xf]
      %v743 = vld [vmem:[%s739 + $0xc] sm:$0xf]
      %v744 = vld [vmem:[%s739 + $0x10] sm:$0xf]
      %v745 = vld [vmem:[%s739 + $0x14] sm:$0xf]
      %v746 = vld [vmem:[%s739 + $0x18] sm:$0xf]
      %v747 = vld [vmem:[%s739 + $0x1c] sm:$0xf]
      %748 = vrot.lane.b32.xlu0 %v668, 124
      %v749 = vpop.permute.xlu0 %748
      %v758 = vunpack.c.l.b16 %v740
      %v759 = vunpack.c.l.b16 %v741
      %v760 = vunpack.c.l.b16 %v742
      %v761 = vunpack.c.l.b16 %v743
      %v762 = vunpack.c.l.b16 %v744
      %v763 = vunpack.c.l.b16 %v745
      %v764 = vunpack.c.l.b16 %v746
      %v765 = vunpack.c.l.b16 %v747
      %v766 = vpack.c.b16 %v759, %v758
      %v767 = vpack.c.b16 %v761, %v760
      %v768 = vpack.c.b16 %v763, %v762
      %v769 = vpack.c.b16 %v765, %v764
      %v775 = vsel %vm193, %v749, 0
      %777 = vmatprep.subr.bf16.mxu0 0
      %778 = vmatpush1.bf16.msra.mxu0 0
      %779 = vmatprep.subr.bf16.mxu0 0
      %780 = vmatpush1.bf16.msra.mxu0 0
      %781 = vmatprep.subr.bf16.mxu0 0
      %782 = vmatpush1.bf16.msra.mxu0 0
      %783 = vmatprep.subr.bf16.mxu0 0
      %784 = vmatpush1.bf16.msra.mxu0 0
      %785 = vmatprep.subr.bf16.mxu0 0
      %786 = vmatpush1.bf16.msra.mxu0 %v769
      %787 = vmatprep.subr.bf16.mxu0 0
      %788 = vmatpush1.bf16.msra.mxu0 %v768
      %789 = vmatprep.subr.bf16.mxu0 0
      %790 = vmatpush1.bf16.msra.mxu0 %v767
      %791 = vmatprep.subr.bf16.mxu0 0
      %792 = vmatpush1.bf16.msra.mxu0 %v766
      %793 = vmatprep.subr.bf16.mxu0 0
      %794 = vmatpush2.bf16.msra.mxu0 0
      %795 = vmatprep.subr.bf16.mxu0 0
      %796 = vmatpush2.bf16.msra.mxu0 0
      %797 = vmatprep.subr.bf16.mxu0 0
      %798 = vmatpush2.bf16.msra.mxu0 0
      %799 = vmatprep.subr.bf16.mxu0 0
      %800 = vmatpush2.bf16.msra.mxu0 0
      %801 = vmatprep.subr.bf16.mxu0 0
      %802 = vmatpush2.bf16.msra.mxu0 0
      %803 = vmatprep.subr.bf16.mxu0 0
      %804 = vmatpush2.bf16.msra.mxu0 0
      %805 = vmatprep.subr.bf16.mxu0 0
      %806 = vmatpush2.bf16.msra.mxu0 0
      %807 = vmatprep.subr.bf16.mxu0 0
      %808 = vmatpush2.bf16.msra.mxu0 0
      %809 = vmatprep.mubr.bf16.mxu0 0
      %810 = vmatmul.mubr.bf16.gmra.mxu0 %v775
      %v811 = vpop.f32.mrf.mxu0
      %v812 = vadd.f32 0.0, %v811
      %v813 = vpop.f32.mrf.mxu0
      %v814 = vpop.f32.mrf.mxu0
      %v815 = vadd.f32 0.0, %v814
      %v816 = vpop.f32.mrf.mxu0
      %817 = vdwg.mxu0
      %v818 = vadd.f32 %v737, %v812
      %v819 = vadd.f32 %v738, %v815
      %s820 = scalar_lea.vmem %s1, 256
      %v821 = vld [vmem:[%s820] sm:$0xf]
      %v822 = vld [vmem:[%s820 + $0x4] sm:$0xf]
      %v823 = vld [vmem:[%s820 + $0x8] sm:$0xf]
      %v824 = vld [vmem:[%s820 + $0xc] sm:$0xf]
      %v825 = vld [vmem:[%s820 + $0x10] sm:$0xf]
      %v826 = vld [vmem:[%s820 + $0x14] sm:$0xf]
      %v827 = vld [vmem:[%s820 + $0x18] sm:$0xf]
      %v828 = vld [vmem:[%s820 + $0x1c] sm:$0xf]
      %829 = vrot.lane.b32.xlu0 %v668, 120
      %v830 = vpop.permute.xlu0 %829
      %v839 = vunpack.c.l.b16 %v821
      %v840 = vunpack.c.l.b16 %v822
      %v841 = vunpack.c.l.b16 %v823
      %v842 = vunpack.c.l.b16 %v824
      %v843 = vunpack.c.l.b16 %v825
      %v844 = vunpack.c.l.b16 %v826
      %v845 = vunpack.c.l.b16 %v827
      %v846 = vunpack.c.l.b16 %v828
      %v847 = vpack.c.b16 %v840, %v839
      %v848 = vpack.c.b16 %v842, %v841
      %v849 = vpack.c.b16 %v844, %v843
      %v850 = vpack.c.b16 %v846, %v845
      %v856 = vsel %vm193, %v830, 0
      %858 = vmatprep.subr.bf16.mxu0 0
      %859 = vmatpush1.bf16.msra.mxu0 0
      %860 = vmatprep.subr.bf16.mxu0 0
      %861 = vmatpush1.bf16.msra.mxu0 0
      %862 = vmatprep.subr.bf16.mxu0 0
      %863 = vmatpush1.bf16.msra.mxu0 0
      %864 = vmatprep.subr.bf16.mxu0 0
      %865 = vmatpush1.bf16.msra.mxu0 0
      %866 = vmatprep.subr.bf16.mxu0 0
      %867 = vmatpush1.bf16.msra.mxu0 %v850
      %868 = vmatprep.subr.bf16.mxu0 0
      %869 = vmatpush1.bf16.msra.mxu0 %v849
      %870 = vmatprep.subr.bf16.mxu0 0
      %871 = vmatpush1.bf16.msra.mxu0 %v848
      %872 = vmatprep.subr.bf16.mxu0 0
      %873 = vmatpush1.bf16.msra.mxu0 %v847
      %874 = vmatprep.subr.bf16.mxu0 0
      %875 = vmatpush2.bf16.msra.mxu0 0
      %876 = vmatprep.subr.bf16.mxu0 0
      %877 = vmatpush2.bf16.msra.mxu0 0
      %878 = vmatprep.subr.bf16.mxu0 0
      %879 = vmatpush2.bf16.msra.mxu0 0
      %880 = vmatprep.subr.bf16.mxu0 0
      %881 = vmatpush2.bf16.msra.mxu0 0
      %882 = vmatprep.subr.bf16.mxu0 0
      %883 = vmatpush2.bf16.msra.mxu0 0
      %884 = vmatprep.subr.bf16.mxu0 0
      %885 = vmatpush2.bf16.msra.mxu0 0
      %886 = vmatprep.subr.bf16.mxu0 0
      %887 = vmatpush2.bf16.msra.mxu0 0
      %888 = vmatprep.subr.bf16.mxu0 0
      %889 = vmatpush2.bf16.msra.mxu0 0
      %890 = vmatprep.mubr.bf16.mxu0 0
      %891 = vmatmul.mubr.bf16.gmra.mxu0 %v856
      %v892 = vpop.f32.mrf.mxu0
      %v893 = vadd.f32 0.0, %v892
      %v894 = vpop.f32.mrf.mxu0
      %v895 = vpop.f32.mrf.mxu0
      %v896 = vadd.f32 0.0, %v895
      %v897 = vpop.f32.mrf.mxu0
      %898 = vdwg.mxu0
      %v899 = vadd.f32 %v818, %v893
      %v900 = vadd.f32 %v819, %v896
      %v901 = vadd.f32 %v899, %v900
      %v902 = vrot.slane %v901, 4
      %v903 = vadd.f32 %v901, %v902
      %v904 = vrot.slane %v903, 2
      %v905 = vadd.f32 %v903, %v904
      %v906 = vrot.slane %v905, 1
      %v907 = vadd.f32 %v905, %v906
      %908 = vst [vmem:[%s141] sm:$0x1] %v907
      %v909 = vmul.f32 %v899, %v899
      %v910 = vmul.f32 %v900, %v900
      %v911 = vadd.f32 %v909, %v910
      %v912 = vrot.slane %v911, 4
      %v913 = vadd.f32 %v911, %v912
      %v914 = vrot.slane %v913, 2
      %v915 = vadd.f32 %v913, %v914
      %v916 = vrot.slane %v915, 1
      %v917 = vadd.f32 %v915, %v916
      %918 = vst [vmem:[%s141 + $0x1] sm:$0x1] %v917
      %p919 = scmp.lt.s32.totalorder %s13, 1
      %s920 = scalar_select %p919, %s13, 1
      %s921 = smul.addr %s920, 2
      %s922 = scalar_lea.vmem %s2, %s921
      // Predicated region
      $region29: #{bn_conv2d_relu.2} parent=27 // pred_check
        %p923 = pneg %p78
      $region30: #{bn_conv2d_relu.2} parent=27 // pred_check_branch
        %925 = sbr.rel (%p923) target = $region32
      $region31: #{bn_conv2d_relu.2} parent=27 // pred_region
        _
      $region32: #{bn_conv2d_relu.2} parent=27 // pred_fallthru
        _
    $region28: #{bn_conv2d_relu.2} parent=5 // pred_fallthru
      _
    %p926 = scmp.le.s32.totalorder 2, %s8
    // Predicated region
    $region33: #{bn_conv2d_relu.2} parent=5 // pred_check
      %p927 = pneg %p926
    $region34: #{bn_conv2d_relu.2} parent=5 // pred_check_branch
      %929 = sbr.rel (%p927) target = $region36
    $region35: #{bn_conv2d_relu.2} parent=5 // pred_region
      %s930 = ssub.s32 %s8, 2
      // Predicated region
      $region37: #{bn_conv2d_relu.2} parent=35 // pred_check
        %p931 = pneg %p84
      $region38: #{bn_conv2d_relu.2} parent=35 // pred_check_branch
        %933 = sbr.rel (%p931) target = $region40
      $region39: #{bn_conv2d_relu.2} parent=35 // pred_region
        %p934 = scmp.lt.s32.totalorder %s14, 1
        %s935 = scalar_select %p934, %s14, 1
        %s936 = smul.addr %s935, 2
        %s937 = scalar_lea.vmem %s2, %s936
      $region40: #{bn_conv2d_relu.2} parent=35 // pred_fallthru
        _
    $region36: #{bn_conv2d_relu.2} parent=5 // pred_fallthru
      _
  $region6: #{bn_conv2d_relu.2} parent=0 // loop_footer
    %s12 = sadd.s32 1, %s8
  $region7: #{bn_conv2d_relu.2} parent=0 // loop_footer_branch
    %7 = sbr.rel target = $region3
  $region8: #{bn_conv2d_relu.2} parent=0 // loop_exit
    _

</llo_original>
